<compile_context>
chip_gen: v6e
topology: v6e:2x2x1
jax: 0.10.0
libtpu: 0.0.40
codegen_flags: <defaults>
</compile_context>

<pallas_src>
import math

import jax
import jax.numpy as jnp
from jax.experimental import pallas as pl
from jax.experimental.pallas import tpu as pltpu

# ----------------------------- config (small, consistent with __init__) -----
CONFIG_VOCAB = 125                      # icae.config.vocab_size
VOCAB_SIZE = CONFIG_VOCAB + 1           # 126  (self.vocab_size)
PAD_TOKEN_ID = VOCAB_SIZE - 1           # 125
MEM_SIZE = 4                            # training_args.fixed_mem_size
MEAN_COMPRESSION_RATE = 4               # training_args.mean_compression_rate
VOCAB_SIZE_WITH_MEM = VOCAB_SIZE + MEM_SIZE          # 130
AE_TOKEN_ID = VOCAB_SIZE_WITH_MEM + 0                # 130
LM_TOKEN_ID = VOCAB_SIZE_WITH_MEM + 1                # 131
FT_TOKEN_ID = VOCAB_SIZE_WITH_MEM + 2                # 132
VOCAB_TOTAL = VOCAB_SIZE_WITH_MEM + 3                # 133 (resized embeddings / lm head)
DIM = 128                               # icae.config.hidden_size
FFN = 256                               # stand-in MLP width
BOS_ID, EOS_ID = 1, 2
MODEL_DTYPE = jnp.bfloat16


def _round_up(x, m):
    return ((x + m - 1) // m) * m


V_PAD = _round_up(VOCAB_TOTAL, 128)     # 256 — lane-dense LM head / logits width
MEM_PAD = _round_up(MEM_SIZE, 8)        # 8 — sublane-aligned memory-row slab per segment


# ----------------------------- Pallas kernels -------------------------------
def _make_encoder_kernel(segs_per_block, s_pad, mem_pad):
    """Residual GELU-MLP block (stand-in for one encoder transformer stack
    producing hidden_states[-1]) over `segs_per_block` padded segment slabs.
    Only the memory-token rows (last `mem_pad` rows of each slab) are written
    back — the full hidden state stays in vregs/VMEM."""
    def kernel(x_ref, w1_ref, b1_ref, w2_ref, mem_ref):
        x = x_ref[...]                                                    # (BR, D) bf16
        h = jnp.dot(x, w1_ref[...], preferred_element_type=jnp.float32)   # (BR, F) f32
        h = jax.nn.gelu(h + b1_ref[...].astype(jnp.float32))
        y = jnp.dot(h.astype(x.dtype), w2_ref[...],
                    preferred_element_type=jnp.float32)                   # (BR, D) f32
        out = x.astype(jnp.float32) + y                                   # (BR, D) f32
        # Static, sublane-aligned extraction of the memory rows of each slab.
        rows = [out[s * s_pad + s_pad - mem_pad:(s + 1) * s_pad, :]
                for s in range(segs_per_block)]
        mem = rows[0] if segs_per_block == 1 else jnp.concatenate(rows, axis=0)
        mem_ref[...] = mem.astype(mem_ref.dtype)
    return kernel


def _make_decoder_kernel(tile_v, vocab_total):
    """Fused decoder: residual GELU-MLP (computed once per row tile, cached in
    VMEM scratch) + LM head over vocab tiles + online log-sum-exp
    cross-entropy (ignore_index=-100).  f32 logits never leave VMEM/vregs;
    bf16 logits are written lane-dense; padded vocab columns are masked out of
    the LSE."""
    def kernel(x_ref, w1_ref, b1_ref, w2_ref, wlm_ref, tgt_ref,
               logits_ref, nll_ref, hid_sc, m_sc, l_sc, t_sc):
        v = pl.program_id(1)

        @pl.when(v == 0)
        def _():
            x = x_ref[...]                                                # (TR, D) bf16
            h = jnp.dot(x, w1_ref[...], preferred_element_type=jnp.float32)
            h = jax.nn.gelu(h + b1_ref[...].astype(jnp.float32))
            y = jnp.dot(h.astype(x.dtype), w2_ref[...],
                        preferred_element_type=jnp.float32)
            hid_sc[...] = (x.astype(jnp.float32) + y).astype(hid_sc.dtype)
            m_sc[...] = jnp.full_like(m_sc, -jnp.inf)
            l_sc[...] = jnp.zeros_like(l_sc)
            t_sc[...] = jnp.zeros_like(t_sc)

        logits = jnp.dot(hid_sc[...], wlm_ref[...],
                         preferred_element_type=jnp.float32)              # (TR, TV) f32
        logits_ref[...] = logits.astype(logits_ref.dtype)                 # lane-dense store

        # --- online log-sum-exp / target-logit accumulation (flash-CE) ---
        col = jax.lax.broadcasted_iota(jnp.int32, logits.shape, 1) + v * tile_v
        vocab_mask = col < vocab_total                                    # mask padded cols
        neg = jnp.float32(-1e30)
        masked = jnp.where(vocab_mask, logits, neg)
        m_new = jnp.maximum(m_sc[...], jnp.max(masked, axis=-1, keepdims=True))
        alpha = jnp.exp(m_sc[...] - m_new)
        p_sum = jnp.sum(jnp.where(vocab_mask, jnp.exp(masked - m_new), 0.0),
                        axis=-1, keepdims=True)
        l_sc[...] = alpha * l_sc[...] + p_sum
        m_sc[...] = m_new
        tgt = tgt_ref[...]                                                # (TR, 1) int32
        t_sc[...] += jnp.sum(jnp.where(col == tgt, logits, 0.0),
                             axis=-1, keepdims=True)

        @pl.when(v == pl.num_programs(1) - 1)
        def _():
            lse = jnp.log(l_sc[...]) + m_sc[...]
            valid = tgt_ref[...] != -100                                  # ignore_index
            nll_ref[...] = jnp.where(valid, lse - t_sc[...], 0.0)
    return kernel


# ----------------------------- Pallas wrappers -------------------------------
def _choose_encoder_blocking(num_segments, s_pad):
    """Batch segments per grid step so each step feeds >=128 rows to the MXU,
    while keeping >=2 grid steps (v7x megacore sharding) when possible."""
    target_rows = 256
    spb = max(1, target_rows // s_pad)
    spb = min(spb, num_segments)
    if num_segments >= 2:
        spb = min(spb, max(1, num_segments // 2))
    num_seg_pad = _round_up(num_segments, spb)
    return spb, num_seg_pad


def encoder_forward(x, w1, b1, w2, num_seg_pad, segs_per_block, s_pad, mem_pad):
    """x: (num_seg_pad * s_pad, D) bf16.  One pallas_call; encoder weights stay
    resident in VMEM across the segment grid; segment axis parallel (v7x
    megacore).  Returns ONLY the memory-token rows, (num_seg_pad*mem_pad, D)
    f32 — the full hidden state never hits HBM."""
    D = x.shape[1]
    F = w1.shape[1]
    block_rows = segs_per_block * s_pad
    grid_steps = num_seg_pad // segs_per_block
    flops = num_seg_pad * 4 * s_pad * D * F
    trans = num_seg_pad * s_pad * F
    bytes_accessed = (2 * x.size + 2 * (w1.size + b1.size + w2.size)
                      + 4 * num_seg_pad * mem_pad * D)
    kernel = _make_encoder_kernel(segs_per_block, s_pad, mem_pad)
    return pl.pallas_call(
        kernel,
        out_shape=jax.ShapeDtypeStruct((num_seg_pad * mem_pad, D), jnp.float32),
        grid=(grid_steps,),
        in_specs=[pl.BlockSpec((block_rows, D), lambda i: (i, 0)),
                  pl.BlockSpec((D, F), lambda i: (0, 0)),
                  pl.BlockSpec((1, F), lambda i: (0, 0)),
                  pl.BlockSpec((F, D), lambda i: (0, 0))],
        out_specs=pl.BlockSpec((segs_per_block * mem_pad, D), lambda i: (i, 0)),
        compiler_params=pltpu.CompilerParams(
            dimension_semantics=("parallel",)),
        cost_estimate=pl.CostEstimate(flops=flops, transcendentals=trans,
                                      bytes_accessed=bytes_accessed),
    )(x, w1, b1.reshape(1, F), w2)


def decoder_fused(pa_embs, w1, b1, w2, wlm_pad, tgt, tile_rows, tile_v):
    """pa_embs: (P_pad, D) bf16; wlm_pad: (D, V_PAD) pre-padded; tgt: (P_pad,)
    int32 shifted targets with -100 ignore.  Returns ((P_pad, V_PAD) bf16
    logits, (P_pad, 1) f32 per-row NLL already zeroed on ignored rows)."""
    Pp, D = pa_embs.shape
    F = w1.shape[1]
    Vp = wlm_pad.shape[1]
    n_rows = Pp // tile_rows
    n_v = Vp // tile_v
    flops = 4 * Pp * D * F + 2 * Pp * D * Vp + 8 * Pp * Vp
    trans = Pp * F + Pp * Vp
    bytes_accessed = (2 * (pa_embs.size + w1.size + b1.size + w2.size + wlm_pad.size)
                      + 4 * Pp + 2 * Pp * Vp + 4 * Pp)
    kernel = _make_decoder_kernel(tile_v, VOCAB_TOTAL)
    logits, nll = pl.pallas_call(
        kernel,
        out_shape=(jax.ShapeDtypeStruct((Pp, Vp), pa_embs.dtype),
                   jax.ShapeDtypeStruct((Pp, 1), jnp.float32)),
        grid=(n_rows, n_v),
        in_specs=[pl.BlockSpec((tile_rows, D), lambda i, v: (i, 0)),
                  pl.BlockSpec((D, F), lambda i, v: (0, 0)),
                  pl.BlockSpec((1, F), lambda i, v: (0, 0)),
                  pl.BlockSpec((F, D), lambda i, v: (0, 0)),
                  pl.BlockSpec((D, tile_v), lambda i, v: (0, v)),
                  pl.BlockSpec((tile_rows, 1), lambda i, v: (i, 0))],
        out_specs=(pl.BlockSpec((tile_rows, tile_v), lambda i, v: (i, v)),
                   pl.BlockSpec((tile_rows, 1), lambda i, v: (i, 0))),
        scratch_shapes=[pltpu.VMEM((tile_rows, D), pa_embs.dtype),   # hidden (per row tile)
                        pltpu.VMEM((tile_rows, 1), jnp.float32),     # running max
                        pltpu.VMEM((tile_rows, 1), jnp.float32),     # running sum-exp
                        pltpu.VMEM((tile_rows, 1), jnp.float32)],    # target logit
        compiler_params=pltpu.CompilerParams(
            dimension_semantics=("parallel", "arbitrary")),
        cost_estimate=pl.CostEstimate(flops=flops, transcendentals=trans,
                                      bytes_accessed=bytes_accessed),
    )(pa_embs, w1, b1.reshape(1, F), w2, wlm_pad, tgt.reshape(Pp, 1))
    return logits, nll


# ----------------------------- parameter init --------------------------------
def init_params(key):
    ks = jax.random.split(key, 8)
    lm_head = (0.02 * jax.random.normal(ks[6], (DIM, VOCAB_TOTAL))).astype(MODEL_DTYPE)
    p = {
        # icae.get_base_model().model.embed_tokens (resized to VOCAB_TOTAL)
        "embed_tokens": (0.02 * jax.random.normal(ks[0], (VOCAB_TOTAL, DIM))).astype(MODEL_DTYPE),
        # self.memory_token_embed = nn.Embedding(mem_size + 3, dim)
        "memory_token_embed": jax.random.normal(ks[1], (MEM_SIZE + 3, DIM)).astype(MODEL_DTYPE),
        # encoder stand-in (icae with 'encadapt' LoRA adapter)
        "enc_w1": (0.02 * jax.random.normal(ks[2], (DIM, FFN))).astype(MODEL_DTYPE),
        "enc_b1": jnp.zeros((FFN,), MODEL_DTYPE),
        "enc_w2": (0.02 * jax.random.normal(ks[3], (FFN, DIM))).astype(MODEL_DTYPE),
        # decoder stand-in (icae with adapters disabled)
        "dec_w1": (0.02 * jax.random.normal(ks[4], (DIM, FFN))).astype(MODEL_DTYPE),
        "dec_b1": jnp.zeros((FFN,), MODEL_DTYPE),
        "dec_w2": (0.02 * jax.random.normal(ks[5], (FFN, DIM))).astype(MODEL_DTYPE),
        # lm head, stored pre-padded to 256 lanes (zero columns) — no per-call pad
        "lm_head": jnp.pad(lm_head, ((0, 0), (0, V_PAD - VOCAB_TOTAL))),
    }
    return p


# ----------------------------- forward (glue + Pallas hot path) --------------
def compute_num_segments(total_length):
    assert total_length > 0
    return math.ceil(total_length / (MEM_SIZE * MEAN_COMPRESSION_RATE))


@jax.jit
def mistral_icae_forward(params, input_ids, prompt_answer_ids, labels):
    # ICAE forward only works for batch_size == 1 (the boolean-mask scatter
    # of compress_outputs requires it) — same assumption here.
    assert input_ids.shape[0] == 1 and prompt_answer_ids.shape[0] == 1
    total_length = input_ids.shape[1]
    num_segments = compute_num_segments(total_length)
    segment_length = math.ceil(total_length / num_segments)
    # token dim padded to a multiple of 16 (bf16 sublane packing), with room
    # for an 8-row aligned memory slab at the tail of each segment.
    S_pad = _round_up(segment_length + MEM_PAD, 16)
    mem_row_start = S_pad - MEM_PAD

    emb_table = params["embed_tokens"]
    mem_table = params["memory_token_embed"]

    # prompt_answer_embs = embed_tokens(prompt_answer_ids)
    prompt_answer_embs = jnp.take(emb_table, prompt_answer_ids[0], axis=0)  # (P, D)

    # --- vectorized segment-embedding construction (no per-segment Python loop) ---
    pad_tokens = num_segments * segment_length - total_length
    ids_flat = jnp.pad(input_ids[0], (0, pad_tokens), constant_values=PAD_TOKEN_ID)
    seg_ids = ids_flat.reshape(num_segments, segment_length)
    append_sequence = jnp.broadcast_to(
        jnp.arange(VOCAB_SIZE, VOCAB_SIZE + MEM_SIZE, dtype=jnp.int32)[None, :],
        (num_segments, MEM_SIZE))
    seg_ids_full = jnp.concatenate([seg_ids, append_sequence], axis=1)   # (ns, sl+mem)
    mem_flag = seg_ids_full >= VOCAB_SIZE
    base_emb = jnp.take(emb_table, jnp.clip(seg_ids_full, 0, VOCAB_TOTAL - 1), axis=0)
    mem_emb = jnp.take(mem_table, jnp.clip(seg_ids_full - VOCAB_SIZE, 0, MEM_SIZE + 2), axis=0)
    seg_emb = jnp.where(mem_flag[..., None], mem_emb, base_emb).astype(MODEL_DTYPE)

    segs_per_block, num_seg_pad = _choose_encoder_blocking(num_segments, S_pad)

    # The stand-in encoder block is row-independent, so the position of the
    # memory rows inside the padded slab does not affect their values; placing
    # them at the sublane-aligned tail lets the kernel extract them with a
    # static aligned slice and emit ONLY those rows to HBM.  Pad rows (and any
    # padded segments) are processed but never consumed.
    slab = jnp.zeros((num_seg_pad, S_pad, DIM), MODEL_DTYPE)
    slab = slab.at[:num_segments, :segment_length].set(seg_emb[:, :segment_length])
    slab = slab.at[:num_segments, mem_row_start:mem_row_start + MEM_SIZE].set(
        seg_emb[:, segment_length:])
    enc_in = slab.reshape(num_seg_pad * S_pad, DIM)

    mem_out = encoder_forward(enc_in, params["enc_w1"], params["enc_b1"],
                              params["enc_w2"], num_seg_pad, segs_per_block,
                              S_pad, MEM_PAD)                        # (nsp*MEM_PAD, D) f32
    # segment_compress_outputs[mem_flag] in the original, row-major order.
    compress_outputs = mem_out.reshape(num_seg_pad, MEM_PAD, DIM)[
        :num_segments, :MEM_SIZE].reshape(num_segments * MEM_SIZE, DIM)
    max_compressed_length = num_segments * MEM_SIZE

    pa_ids = prompt_answer_ids[0]                          # (P,)
    # prompt_answer_embs[decoder_mem_flag] = compress_outputs  (row-major order)
    decoder_mem_flag = (pa_ids >= VOCAB_SIZE) & (pa_ids < VOCAB_SIZE + MEM_SIZE)
    order = jnp.cumsum(decoder_mem_flag.astype(jnp.int32)) - 1
    gathered = jnp.take(compress_outputs,
                        jnp.clip(order, 0, max_compressed_length - 1), axis=0)
    pa_embs = jnp.where(decoder_mem_flag[:, None], gathered, prompt_answer_embs)

    # special tokens (ae / lm / ft) use memory_token_embed(id - vocab_size)
    special_prompt = pa_ids >= VOCAB_SIZE_WITH_MEM
    special_emb = jnp.take(mem_table,
                           jnp.clip(pa_ids - VOCAB_SIZE, 0, MEM_SIZE + 2), axis=0)
    pa_embs = jnp.where(special_prompt[:, None], special_emb, pa_embs).astype(MODEL_DTYPE)

    P = pa_embs.shape[0]
    tile_rows = 128 if P > 128 else _round_up(P, 16)
    P_pad = _round_up(P, tile_rows)
    if P_pad > P:
        pa_embs = jnp.pad(pa_embs, ((0, P_pad - P), (0, 0)))

    # shifted CE targets: row i predicts labels[i+1]; last/padded rows ignored
    # (equivalent to logits[:, :-1] vs labels[:, 1:] with ignore_index=-100).
    tgt = jnp.full((P_pad,), -100, jnp.int32)
    tgt = tgt.at[:P - 1].set(labels[0, 1:].astype(jnp.int32))

    # vocab tile: lane-dense, multiple of 256 when possible (v6e/v7x MXU width)
    tile_v = 256 if V_PAD % 256 == 0 else 128

    # decoder (eval path: icae with adapters disabled) — fused Pallas kernel:
    # MLP + LM head + online-LSE cross-entropy on f32 logits in-register.
    # TODO(synk): training path uses `self.decoder`, which is not defined in
    # the provided module; only the adapter-disabled eval path is implemented.
    logits_pad, nll = decoder_fused(pa_embs, params["dec_w1"], params["dec_b1"],
                                    params["dec_w2"], params["lm_head"], tgt,
                                    tile_rows, tile_v)
    valid_cnt = jnp.sum((tgt != -100).astype(jnp.float32))
    # NOTE: PyTorch CrossEntropyLoss(mean) returns NaN when every target is
    # ignore_index; this guard returns 0.0 in that degenerate case.
    loss = jnp.sum(nll) / jnp.maximum(valid_cnt, 1.0)
    logits = logits_pad[:P, :VOCAB_TOTAL][None]            # (1, P, V), model dtype
    return {"loss": loss, "logits": logits}


# ----------------------------- main -------------------------------------------
if __name__ == "__main__":
    key = jax.random.PRNGKey(0)
    pkey, ikey, akey = jax.random.split(key, 3)
    params = init_params(pkey)

    # input_ids: (1, 32) text tokens < vocab_size  -> 2 segments of length 16
    L = 32
    input_ids = jax.random.randint(ikey, (1, L), 3, CONFIG_VOCAB, dtype=jnp.int32)

    # prompt_answer_ids: [bos, 8 memory-slot tokens, <AE>, 5 answer tokens, eos]
    mem_slots = jnp.tile(jnp.arange(VOCAB_SIZE, VOCAB_SIZE + MEM_SIZE,
                                    dtype=jnp.int32), 2)                  # 8 slots
    answer = jax.random.randint(akey, (5,), 3, CONFIG_VOCAB, dtype=jnp.int32)
    prompt_answer_ids = jnp.concatenate([
        jnp.array([BOS_ID], jnp.int32), mem_slots,
        jnp.array([AE_TOKEN_ID], jnp.int32), answer,
        jnp.array([EOS_ID], jnp.int32)])[None, :]                         # (1, 16)

    # labels: -100 on the prompt part, token ids on the answer part
    P = prompt_answer_ids.shape[1]
    pos = jnp.arange(P)
    labels = jnp.where(pos[None, :] >= 10, prompt_answer_ids, -100).astype(jnp.int32)

    out = mistral_icae_forward(params, input_ids, prompt_answer_ids, labels)
    jax.block_until_ready(out["loss"])
    jax.block_until_ready(out["logits"])
    assert out["logits"].shape == (1, P, VOCAB_TOTAL)
    assert bool(jnp.isfinite(out["loss"]))
    print("KERNEL_OK")
</pallas_src>

<mosaic_0001>
module attributes {stable_mosaic.version = 11 : i64} {
  func.func @kernel(%arg0: i32, %arg1: memref<32x128xbf16, #tpu.memory_space<vmem>>, %arg2: memref<128x256xbf16, #tpu.memory_space<vmem>>, %arg3: memref<1x256xbf16, #tpu.memory_space<vmem>>, %arg4: memref<256x128xbf16, #tpu.memory_space<vmem>>, %arg5: memref<8x128xf32, #tpu.memory_space<vmem>>) attributes {dimension_semantics = [#tpu.dimension_semantics<parallel>], iteration_bounds = array<i64: 2>, scalar_prefetch = 0 : i64, scratch_operands = 0 : i64, tpu.core_type = #tpu.core_type<tc>, window_params = [{transform_indices = @transform_0, window_bounds = array<i64: 32, 128>}, {pipeline_mode = #tpu.pipeline_mode<synchronous>, transform_indices = @transform_1, window_bounds = array<i64: 128, 256>}, {pipeline_mode = #tpu.pipeline_mode<synchronous>, transform_indices = @transform_2, window_bounds = array<i64: 1, 256>}, {pipeline_mode = #tpu.pipeline_mode<synchronous>, transform_indices = @transform_3, window_bounds = array<i64: 256, 128>}, {transform_indices = @transform_4, window_bounds = array<i64: 8, 128>}]} {
    %c0 = arith.constant 0 : index
    %c0_0 = arith.constant 0 : index
    %0 = vector.load %arg1[%c0, %c0_0] : memref<32x128xbf16, #tpu.memory_space<vmem>>, vector<32x128xbf16>
    %c0_1 = arith.constant 0 : index
    %c0_2 = arith.constant 0 : index
    %1 = vector.load %arg2[%c0_1, %c0_2] : memref<128x256xbf16, #tpu.memory_space<vmem>>, vector<128x256xbf16>
    %cst = arith.constant dense<0.000000e+00> : vector<32x256xf32>
    %2 = tpu.matmul %0, %1, %cst {dimension_numbers = #tpu.dot_dimension_numbers<[1], [0], [0], [1], [0, 0, 1, 1], [], []>} : vector<32x128xbf16>, vector<128x256xbf16>, vector<32x256xf32> -> vector<32x256xf32>
    %c0_3 = arith.constant 0 : index
    %c0_4 = arith.constant 0 : index
    %3 = vector.load %arg3[%c0_3, %c0_4] : memref<1x256xbf16, #tpu.memory_space<vmem>>, vector<1x256xbf16>
    %4 = arith.extf %3 : vector<1x256xbf16> to vector<1x256xf32>
    %5 = vector.broadcast %4 : vector<1x256xf32> to vector<32x256xf32>
    %6 = arith.addf %2, %5 : vector<32x256xf32>
    %7 = arith.mulf %6, %6 : vector<32x256xf32>
    %8 = arith.mulf %6, %7 : vector<32x256xf32>
    %cst_5 = arith.constant 4.471500e-02 : f32
    %9 = vector.broadcast %cst_5 : f32 to vector<32x256xf32>
    %10 = arith.mulf %9, %8 : vector<32x256xf32>
    %11 = arith.addf %6, %10 : vector<32x256xf32>
    %cst_6 = arith.constant 0.797884583 : f32
    %12 = vector.broadcast %cst_6 : f32 to vector<32x256xf32>
    %13 = arith.mulf %12, %11 : vector<32x256xf32>
    %14 = math.tanh %13 : vector<32x256xf32>
    %cst_7 = arith.constant 1.000000e+00 : f32
    %15 = vector.broadcast %cst_7 : f32 to vector<32x256xf32>
    %16 = arith.addf %15, %14 : vector<32x256xf32>
    %cst_8 = arith.constant 5.000000e-01 : f32
    %17 = vector.broadcast %cst_8 : f32 to vector<32x256xf32>
    %18 = arith.mulf %17, %16 : vector<32x256xf32>
    %19 = arith.mulf %6, %18 : vector<32x256xf32>
    %20 = arith.truncf %19 : vector<32x256xf32> to vector<32x256xbf16>
    %c0_9 = arith.constant 0 : index
    %c0_10 = arith.constant 0 : index
    %21 = vector.load %arg4[%c0_9, %c0_10] : memref<256x128xbf16, #tpu.memory_space<vmem>>, vector<256x128xbf16>
    %cst_11 = arith.constant dense<0.000000e+00> : vector<32x128xf32>
    %22 = tpu.matmul %20, %21, %cst_11 {dimension_numbers = #tpu.dot_dimension_numbers<[1], [0], [0], [1], [0, 0, 1, 1], [], []>} : vector<32x256xbf16>, vector<256x128xbf16>, vector<32x128xf32> -> vector<32x128xf32>
    %23 = arith.extf %0 : vector<32x128xbf16> to vector<32x128xf32>
    %24 = arith.addf %23, %22 : vector<32x128xf32>
    %25 = vector.extract_strided_slice %24 {offsets = [24, 0], sizes = [8, 128], strides = [1, 1]} : vector<32x128xf32> to vector<8x128xf32>
    %c0_12 = arith.constant 0 : index
    %c0_13 = arith.constant 0 : index
    %26 = vector.load %arg5[%c0_12, %c0_13] : memref<8x128xf32, #tpu.memory_space<vmem>>, vector<8x128xf32>
    tpu.vector_store %arg5[%c0_12, %c0_13], %25 {strides = array<i32>} : memref<8x128xf32, #tpu.memory_space<vmem>>, vector<8x128xf32>,
    return
  }
  func.func @transform_0(%arg0: i32) -> (i32, i32) {
    %c0_i32 = arith.constant 0 : i32
    %c0_i32_0 = arith.constant 0 : i32
    return %arg0, %c0_i32 : i32, i32
  }
  func.func @transform_1(%arg0: i32) -> (i32, i32) {
    %c0_i32 = arith.constant 0 : i32
    %c0_i32_0 = arith.constant 0 : i32
    %c0_i32_1 = arith.constant 0 : i32
    return %c0_i32, %c0_i32_0 : i32, i32
  }
  func.func @transform_2(%arg0: i32) -> (i32, i32) {
    %c0_i32 = arith.constant 0 : i32
    %c0_i32_0 = arith.constant 0 : i32
    %c0_i32_1 = arith.constant 0 : i32
    return %c0_i32, %c0_i32_0 : i32, i32
  }
  func.func @transform_3(%arg0: i32) -> (i32, i32) {
    %c0_i32 = arith.constant 0 : i32
    %c0_i32_0 = arith.constant 0 : i32
    %c0_i32_1 = arith.constant 0 : i32
    return %c0_i32, %c0_i32_0 : i32, i32
  }
  func.func @transform_4(%arg0: i32) -> (i32, i32) {
    %c0_i32 = arith.constant 0 : i32
    %c0_i32_0 = arith.constant 0 : i32
    return %arg0, %c0_i32 : i32, i32
  }
}

module attributes {stable_mosaic.version = 11 : i64} {
  func.func @kernel(%arg0: i32, %arg1: i32, %arg2: memref<16x128xbf16, #tpu.memory_space<vmem>>, %arg3: memref<128x256xbf16, #tpu.memory_space<vmem>>, %arg4: memref<1x256xbf16, #tpu.memory_space<vmem>>, %arg5: memref<256x128xbf16, #tpu.memory_space<vmem>>, %arg6: memref<128x256xbf16, #tpu.memory_space<vmem>>, %arg7: memref<16x1xi32, #tpu.memory_space<vmem>>, %arg8: memref<16x256xbf16, #tpu.memory_space<vmem>>, %arg9: memref<16x1xf32, #tpu.memory_space<vmem>>, %arg10: memref<16x128xbf16, #tpu.memory_space<vmem>>, %arg11: memref<16x1xf32, #tpu.memory_space<vmem>>, %arg12: memref<16x1xf32, #tpu.memory_space<vmem>>, %arg13: memref<16x1xf32, #tpu.memory_space<vmem>>) attributes {dimension_semantics = [#tpu.dimension_semantics<parallel>, #tpu.dimension_semantics<arbitrary>], iteration_bounds = array<i64: 1, 1>, scalar_prefetch = 0 : i64, scratch_operands = 4 : i64, tpu.core_type = #tpu.core_type<tc>, window_params = [{transform_indices = @transform_0, window_bounds = array<i64: 16, 128>}, {pipeline_mode = #tpu.pipeline_mode<synchronous>, transform_indices = @transform_1, window_bounds = array<i64: 128, 256>}, {pipeline_mode = #tpu.pipeline_mode<synchronous>, transform_indices = @transform_2, window_bounds = array<i64: 1, 256>}, {pipeline_mode = #tpu.pipeline_mode<synchronous>, transform_indices = @transform_3, window_bounds = array<i64: 256, 128>}, {transform_indices = @transform_4, window_bounds = array<i64: 128, 256>}, {transform_indices = @transform_5, window_bounds = array<i64: 16, 1>}, {transform_indices = @transform_6, window_bounds = array<i64: 16, 256>}, {transform_indices = @transform_7, window_bounds = array<i64: 16, 1>}]} {
    %c0_i32 = arith.constant 0 : i32
    %0 = arith.cmpi eq, %arg1, %c0_i32 : i32
    %1 = arith.extui %0 : i1 to i32
    %c0_i32_0 = arith.constant 0 : i32
    %2 = arith.cmpi ne, %1, %c0_i32_0 : i32
    scf.if %2 {
      %c0_30 = arith.constant 0 : index
      %c0_31 = arith.constant 0 : index
      %48 = vector.load %arg2[%c0_30, %c0_31] : memref<16x128xbf16, #tpu.memory_space<vmem>>, vector<16x128xbf16>
      %c0_32 = arith.constant 0 : index
      %c0_33 = arith.constant 0 : index
      %49 = vector.load %arg3[%c0_32, %c0_33] : memref<128x256xbf16, #tpu.memory_space<vmem>>, vector<128x256xbf16>
      %cst_34 = arith.constant dense<0.000000e+00> : vector<16x256xf32>
      %50 = tpu.matmul %48, %49, %cst_34 {dimension_numbers = #tpu.dot_dimension_numbers<[1], [0], [0], [1], [0, 0, 1, 1], [], []>} : vector<16x128xbf16>, vector<128x256xbf16>, vector<16x256xf32> -> vector<16x256xf32>
      %c0_35 = arith.constant 0 : index
      %c0_36 = arith.constant 0 : index
      %51 = vector.load %arg4[%c0_35, %c0_36] : memref<1x256xbf16, #tpu.memory_space<vmem>>, vector<1x256xbf16>
      %52 = arith.extf %51 : vector<1x256xbf16> to vector<1x256xf32>
      %53 = vector.broadcast %52 : vector<1x256xf32> to vector<16x256xf32>
      %54 = arith.addf %50, %53 : vector<16x256xf32>
      %55 = arith.mulf %54, %54 : vector<16x256xf32>
      %56 = arith.mulf %54, %55 : vector<16x256xf32>
      %cst_37 = arith.constant 4.471500e-02 : f32
      %57 = vector.broadcast %cst_37 : f32 to vector<16x256xf32>
      %58 = arith.mulf %57, %56 : vector<16x256xf32>
      %59 = arith.addf %54, %58 : vector<16x256xf32>
      %cst_38 = arith.constant 0.797884583 : f32
      %60 = vector.broadcast %cst_38 : f32 to vector<16x256xf32>
      %61 = arith.mulf %60, %59 : vector<16x256xf32>
      %62 = math.tanh %61 : vector<16x256xf32>
      %cst_39 = arith.constant 1.000000e+00 : f32
      %63 = vector.broadcast %cst_39 : f32 to vector<16x256xf32>
      %64 = arith.addf %63, %62 : vector<16x256xf32>
      %cst_40 = arith.constant 5.000000e-01 : f32
      %65 = vector.broadcast %cst_40 : f32 to vector<16x256xf32>
      %66 = arith.mulf %65, %64 : vector<16x256xf32>
      %67 = arith.mulf %54, %66 : vector<16x256xf32>
      %68 = arith.truncf %67 : vector<16x256xf32> to vector<16x256xbf16>
      %c0_41 = arith.constant 0 : index
      %c0_42 = arith.constant 0 : index
      %69 = vector.load %arg5[%c0_41, %c0_42] : memref<256x128xbf16, #tpu.memory_space<vmem>>, vector<256x128xbf16>
      %cst_43 = arith.constant dense<0.000000e+00> : vector<16x128xf32>
      %70 = tpu.matmul %68, %69, %cst_43 {dimension_numbers = #tpu.dot_dimension_numbers<[1], [0], [0], [1], [0, 0, 1, 1], [], []>} : vector<16x256xbf16>, vector<256x128xbf16>, vector<16x128xf32> -> vector<16x128xf32>
      %71 = arith.extf %48 : vector<16x128xbf16> to vector<16x128xf32>
      %72 = arith.addf %71, %70 : vector<16x128xf32>
      %73 = arith.truncf %72 : vector<16x128xf32> to vector<16x128xbf16>
      %c0_44 = arith.constant 0 : index
      %c0_45 = arith.constant 0 : index
      %74 = vector.load %arg10[%c0_44, %c0_45] : memref<16x128xbf16, #tpu.memory_space<vmem>>, vector<16x128xbf16>
      tpu.vector_store %arg10[%c0_44, %c0_45], %73 {strides = array<i32>} : memref<16x128xbf16, #tpu.memory_space<vmem>>, vector<16x128xbf16>,
      %cst_46 = arith.constant 0xFF800000 : f32
      %75 = vector.broadcast %cst_46 : f32 to vector<16x1xf32>
      %c0_47 = arith.constant 0 : index
      %c0_48 = arith.constant 0 : index
      %76 = vector.load %arg11[%c0_47, %c0_48] : memref<16x1xf32, #tpu.memory_space<vmem>>, vector<16x1xf32>
      tpu.vector_store %arg11[%c0_47, %c0_48], %75 {strides = array<i32>} : memref<16x1xf32, #tpu.memory_space<vmem>>, vector<16x1xf32>,
      %cst_49 = arith.constant 0.000000e+00 : f32
      %77 = vector.broadcast %cst_49 : f32 to vector<16x1xf32>
      %c0_50 = arith.constant 0 : index
      %c0_51 = arith.constant 0 : index
      %78 = vector.load %arg12[%c0_50, %c0_51] : memref<16x1xf32, #tpu.memory_space<vmem>>, vector<16x1xf32>
      tpu.vector_store %arg12[%c0_50, %c0_51], %77 {strides = array<i32>} : memref<16x1xf32, #tpu.memory_space<vmem>>, vector<16x1xf32>,
      %cst_52 = arith.constant 0.000000e+00 : f32
      %79 = vector.broadcast %cst_52 : f32 to vector<16x1xf32>
      %c0_53 = arith.constant 0 : index
      %c0_54 = arith.constant 0 : index
      %80 = vector.load %arg13[%c0_53, %c0_54] : memref<16x1xf32, #tpu.memory_space<vmem>>, vector<16x1xf32>
      tpu.vector_store %arg13[%c0_53, %c0_54], %79 {strides = array<i32>} : memref<16x1xf32, #tpu.memory_space<vmem>>, vector<16x1xf32>,
    } else {
    }
    %c0 = arith.constant 0 : index
    %c0_1 = arith.constant 0 : index
    %3 = vector.load %arg10[%c0, %c0_1] : memref<16x128xbf16, #tpu.memory_space<vmem>>, vector<16x128xbf16>
    %c0_2 = arith.constant 0 : index
    %c0_3 = arith.constant 0 : index
    %4 = vector.load %arg6[%c0_2, %c0_3] : memref<128x256xbf16, #tpu.memory_space<vmem>>, vector<128x256xbf16>
    %cst = arith.constant dense<0.000000e+00> : vector<16x256xf32>
    %5 = tpu.matmul %3, %4, %cst {dimension_numbers = #tpu.dot_dimension_numbers<[1], [0], [0], [1], [0, 0, 1, 1], [], []>} : vector<16x128xbf16>, vector<128x256xbf16>, vector<16x256xf32> -> vector<16x256xf32>
    %6 = arith.truncf %5 : vector<16x256xf32> to vector<16x256xbf16>
    %c0_4 = arith.constant 0 : index
    %c0_5 = arith.constant 0 : index
    %7 = vector.load %arg8[%c0_4, %c0_5] : memref<16x256xbf16, #tpu.memory_space<vmem>>, vector<16x256xbf16>
    tpu.vector_store %arg8[%c0_4, %c0_5], %6 {strides = array<i32>} : memref<16x256xbf16, #tpu.memory_space<vmem>>, vector<16x256xbf16>,
    %8 = tpu.iota {dimensions = array<i32: 1>} : vector<16x256xi32>
    %c256_i32 = arith.constant 256 : i32
    %9 = arith.muli %arg1, %c256_i32 : i32
    %10 = vector.broadcast %9 : i32 to vector<16x256xi32>
    %11 = arith.addi %8, %10 : vector<16x256xi32>
    %c133_i32 = arith.constant 133 : i32
    %12 = vector.broadcast %c133_i32 : i32 to vector<16x256xi32>
    %13 = arith.cmpi slt, %11, %12 : vector<16x256xi32>
    %cst_6 = arith.constant -1.000000e+30 : f32
    %14 = vector.broadcast %cst_6 : f32 to vector<16x256xf32>
    %15 = arith.select %13, %5, %14 : vector<16x256xi1>, vector<16x256xf32>
    %c0_7 = arith.constant 0 : index
    %c0_8 = arith.constant 0 : index
    %16 = vector.load %arg11[%c0_7, %c0_8] : memref<16x1xf32, #tpu.memory_space<vmem>>, vector<16x1xf32>
    %cst_9 = arith.constant dense<0xFF800000> : vector<16xf32>
    %17 = vector.multi_reduction <maximumf>, %15, %cst_9 [1] : vector<16x256xf32> to vector<16xf32>
    %18 = vector.shape_cast %17 : vector<16xf32> to vector<16x1xf32>
    %19 = arith.maximumf %16, %18 : vector<16x1xf32>
    %c0_10 = arith.constant 0 : index
    %c0_11 = arith.constant 0 : index
    %20 = vector.load %arg11[%c0_10, %c0_11] : memref<16x1xf32, #tpu.memory_space<vmem>>, vector<16x1xf32>
    %21 = arith.subf %20, %19 : vector<16x1xf32>
    %22 = math.exp %21 : vector<16x1xf32>
    %23 = vector.broadcast %19 : vector<16x1xf32> to vector<16x256xf32>
    %24 = arith.subf %15, %23 : vector<16x256xf32>
    %25 = math.exp %24 : vector<16x256xf32>
    %cst_12 = arith.constant 0.000000e+00 : f32
    %26 = vector.broadcast %cst_12 : f32 to vector<16x256xf32>
    %27 = arith.select %13, %25, %26 : vector<16x256xi1>, vector<16x256xf32>
    %cst_13 = arith.constant dense<0.000000e+00> : vector<16xf32>
    %28 = vector.multi_reduction <add>, %27, %cst_13 [1] : vector<16x256xf32> to vector<16xf32>
    %29 = vector.shape_cast %28 : vector<16xf32> to vector<16x1xf32>
    %c0_14 = arith.constant 0 : index
    %c0_15 = arith.constant 0 : index
    %30 = vector.load %arg12[%c0_14, %c0_15] : memref<16x1xf32, #tpu.memory_space<vmem>>, vector<16x1xf32>
    %31 = arith.mulf %22, %30 : vector<16x1xf32>
    %32 = arith.addf %31, %29 : vector<16x1xf32>
    %c0_16 = arith.constant 0 : index
    %c0_17 = arith.constant 0 : index
    %33 = vector.load %arg12[%c0_16, %c0_17] : memref<16x1xf32, #tpu.memory_space<vmem>>, vector<16x1xf32>
    tpu.vector_store %arg12[%c0_16, %c0_17], %32 {strides = array<i32>} : memref<16x1xf32, #tpu.memory_space<vmem>>, vector<16x1xf32>,
    %c0_18 = arith.constant 0 : index
    %c0_19 = arith.constant 0 : index
    %34 = vector.load %arg11[%c0_18, %c0_19] : memref<16x1xf32, #tpu.memory_space<vmem>>, vector<16x1xf32>
    tpu.vector_store %arg11[%c0_18, %c0_19], %19 {strides = array<i32>} : memref<16x1xf32, #tpu.memory_space<vmem>>, vector<16x1xf32>,
    %c0_20 = arith.constant 0 : index
    %c0_21 = arith.constant 0 : index
    %35 = vector.load %arg7[%c0_20, %c0_21] : memref<16x1xi32, #tpu.memory_space<vmem>>, vector<16x1xi32>
    %c0_22 = arith.constant 0 : index
    %c0_23 = arith.constant 0 : index
    %36 = vector.load %arg13[%c0_22, %c0_23] : memref<16x1xf32, #tpu.memory_space<vmem>>, vector<16x1xf32>
    %37 = vector.broadcast %35 : vector<16x1xi32> to vector<16x256xi32>
    %38 = arith.cmpi eq, %11, %37 : vector<16x256xi32>
    %cst_24 = arith.constant 0.000000e+00 : f32
    %39 = vector.broadcast %cst_24 : f32 to vector<16x256xf32>
    %40 = arith.select %38, %5, %39 : vector<16x256xi1>, vector<16x256xf32>
    %cst_25 = arith.constant dense<0.000000e+00> : vector<16xf32>
    %41 = vector.multi_reduction <add>, %40, %cst_25 [1] : vector<16x256xf32> to vector<16xf32>
    %42 = vector.shape_cast %41 : vector<16xf32> to vector<16x1xf32>
    %43 = arith.addf %36, %42 : vector<16x1xf32>
    %c0_26 = arith.constant 0 : index
    %c0_27 = arith.constant 0 : index
    %44 = vector.load %arg13[%c0_26, %c0_27] : memref<16x1xf32, #tpu.memory_space<vmem>>, vector<16x1xf32>
    tpu.vector_store %arg13[%c0_26, %c0_27], %43 {strides = array<i32>} : memref<16x1xf32, #tpu.memory_space<vmem>>, vector<16x1xf32>,
    %c0_i32_28 = arith.constant 0 : i32
    %45 = arith.cmpi eq, %arg1, %c0_i32_28 : i32
    %46 = arith.extui %45 : i1 to i32
    %c0_i32_29 = arith.constant 0 : i32
    %47 = arith.cmpi ne, %46, %c0_i32_29 : i32
    scf.if %47 {
      %c0_30 = arith.constant 0 : index
      %c0_31 = arith.constant 0 : index
      %48 = vector.load %arg12[%c0_30, %c0_31] : memref<16x1xf32, #tpu.memory_space<vmem>>, vector<16x1xf32>
      %49 = math.log %48 : vector<16x1xf32>
      %c0_32 = arith.constant 0 : index
      %c0_33 = arith.constant 0 : index
      %50 = vector.load %arg11[%c0_32, %c0_33] : memref<16x1xf32, #tpu.memory_space<vmem>>, vector<16x1xf32>
      %51 = arith.addf %49, %50 : vector<16x1xf32>
      %c0_34 = arith.constant 0 : index
      %c0_35 = arith.constant 0 : index
      %52 = vector.load %arg7[%c0_34, %c0_35] : memref<16x1xi32, #tpu.memory_space<vmem>>, vector<16x1xi32>
      %c-100_i32 = arith.constant -100 : i32
      %53 = vector.broadcast %c-100_i32 : i32 to vector<16x1xi32>
      %54 = arith.cmpi ne, %52, %53 : vector<16x1xi32>
      %c0_36 = arith.constant 0 : index
      %c0_37 = arith.constant 0 : index
      %55 = vector.load %arg13[%c0_36, %c0_37] : memref<16x1xf32, #tpu.memory_space<vmem>>, vector<16x1xf32>
      %56 = arith.subf %51, %55 : vector<16x1xf32>
      %cst_38 = arith.constant 0.000000e+00 : f32
      %57 = vector.broadcast %cst_38 : f32 to vector<16x1xf32>
      %58 = arith.select %54, %56, %57 : vector<16x1xi1>, vector<16x1xf32>
      %c0_39 = arith.constant 0 : index
      %c0_40 = arith.constant 0 : index
      %59 = vector.load %arg9[%c0_39, %c0_40] : memref<16x1xf32, #tpu.memory_space<vmem>>, vector<16x1xf32>
      tpu.vector_store %arg9[%c0_39, %c0_40], %58 {strides = array<i32>} : memref<16x1xf32, #tpu.memory_space<vmem>>, vector<16x1xf32>,
    } else {
    }
    return
  }
  func.func @transform_0(%arg0: i32, %arg1: i32) -> (i32, i32) {
    %c0_i32 = arith.constant 0 : i32
    %c0_i32_0 = arith.constant 0 : i32
    return %arg0, %c0_i32 : i32, i32
  }
  func.func @transform_1(%arg0: i32, %arg1: i32) -> (i32, i32) {
    %c0_i32 = arith.constant 0 : i32
    %c0_i32_0 = arith.constant 0 : i32
    %c0_i32_1 = arith.constant 0 : i32
    return %c0_i32, %c0_i32_0 : i32, i32
  }
  func.func @transform_2(%arg0: i32, %arg1: i32) -> (i32, i32) {
    %c0_i32 = arith.constant 0 : i32
    %c0_i32_0 = arith.constant 0 : i32
    %c0_i32_1 = arith.constant 0 : i32
    return %c0_i32, %c0_i32_0 : i32, i32
  }
  func.func @transform_3(%arg0: i32, %arg1: i32) -> (i32, i32) {
    %c0_i32 = arith.constant 0 : i32
    %c0_i32_0 = arith.constant 0 : i32
    %c0_i32_1 = arith.constant 0 : i32
    return %c0_i32, %c0_i32_0 : i32, i32
  }
  func.func @transform_4(%arg0: i32, %arg1: i32) -> (i32, i32) {
    %c0_i32 = arith.constant 0 : i32
    %c0_i32_0 = arith.constant 0 : i32
    return %c0_i32, %arg1 : i32, i32
  }
  func.func @transform_5(%arg0: i32, %arg1: i32) -> (i32, i32) {
    %c0_i32 = arith.constant 0 : i32
    %c0_i32_0 = arith.constant 0 : i32
    return %arg0, %c0_i32 : i32, i32
  }
  func.func @transform_6(%arg0: i32, %arg1: i32) -> (i32, i32) {
    %c0_i32 = arith.constant 0 : i32
    return %arg0, %arg1 : i32, i32
  }
  func.func @transform_7(%arg0: i32, %arg1: i32) -> (i32, i32) {
    %c0_i32 = arith.constant 0 : i32
    %c0_i32_0 = arith.constant 0 : i32
    return %arg0, %c0_i32 : i32, i32
  }
}

</mosaic_0001>

<llo_original>
// kernel: mistral_icae_forward.2
$region0: #{mistral_icae_forward.2}
  #allocation0 [shape = 'u32[]', space=smem, size = 0x4, offset = 0x4, fixed_abs, tag = 'smem constant byte address 0x4 - core index']
  #allocation1 [shape = 'u32[144,128]{1,0:T(1,128)}', space=vmem, size = 0x12000, scoped, tag = 'internal scratch']
  %s0 = inlined_call_operand.vmem [shape: bf16[64,128], index: 0, kind: input, shape index: {}]
  %s1 = inlined_call_operand.vmem [shape: bf16[128,256], index: 1, kind: input, shape index: {}]
  %s2 = inlined_call_operand.vmem [shape: bf16[1,256], index: 2, kind: input, shape index: {}]
  %s3 = inlined_call_operand.vmem [shape: bf16[256,128], index: 3, kind: input, shape index: {}]
  %s4 = inlined_call_operand.vmem [shape: f32[16,128], index: 4, kind: output, shape index: {}]
  %s5 = sld [smem:[#allocation0]]
  $region49: #{mistral_icae_forward.2} parent=0
    _
  %s7 = ssub.s32 1, %s5
  %s8 = scalar_select 0, %s7, %s5
  loop: start=0, step=1, limit=4
  $region2: #{mistral_icae_forward.2} parent=0 // loop_pre_header
    _
  $region3: #{mistral_icae_forward.2} parent=0 // loop_header
    %s10 = sphi 0, %s14
    %p11 = scmp.ge.s32.totalorder %s10, 4
    %s20 = sphi 0, %s22
    %s23 = sphi 0, %s20
    %s24 = sphi 0, %s23
    %s40 = sphi 0, %s24
    %s44 = sphi 0, %s44
    %s46 = sphi 0, %s44
    %s47 = sphi 0, %s46
    %s61 = sphi 0, %s47
    %s65 = sphi 0, %s65
    %s67 = sphi 0, %s65
    %s68 = sphi 0, %s67
    %s82 = sphi 0, %s68
    %s86 = sphi 0, %s86
    %s88 = sphi 0, %s86
    %s89 = sphi 0, %s88
    %s103 = sphi 0, %s89
    %s109 = sphi 0, %s111
    %s112 = sphi 0, %s109
    %s113 = sphi 0, %s112
    %s129 = sphi 0, %s113
  $region4: #{mistral_icae_forward.2} parent=0 // loop_header_branch
    %13 = sbr.rel (%p11) target = $region8
  $region5: #{mistral_icae_forward.2} parent=0 // loop_body
    %s15 = ssub.s32 %s10, 1
    %s16 = ssub.s32 %s10, 2
    %s17 = sadd.s32 %s10, 1
    %s18 = ssub.s32 %s10, %s17
    %p19 = scmp.eq.s32.totalorder %s18, 0
    %s21 = sadd.s32 %s20, 1
    %s22 = scalar_select %p19, %s20, %s21
    %p25 = pneg %p19
    %p26 = scmp.eq.s32.totalorder %s10, 1
    %p27 = por %p25, %p26
    %p28 = scmp.ne.s32.totalorder %s20, %s23
    %p29 = scmp.eq.s32.totalorder %s10, 0
    %p30 = por %p28, %p29
    %p31 = scmp.ne.s32.totalorder %s20, %s23
    %p32 = scmp.eq.s32.totalorder %s15, 1
    %p33 = por %p31, %p32
    %p34 = scmp.ne.s32.totalorder %s23, %s24
    %p35 = scmp.eq.s32.totalorder %s15, 0
    %p36 = por %p34, %p35
    %p37 = scmp.ne.s32.totalorder %s23, %s24
    %p38 = scmp.eq.s32.totalorder %s16, 1
    %p39 = por %p37, %p38
    %p41 = scmp.ne.s32.totalorder %s24, %s40
    %p42 = scmp.eq.s32.totalorder %s16, 0
    %p43 = por %p41, %p42
    %s45 = sadd.s32 %s44, 1
    %p48 = scmp.eq.s32.totalorder %s10, 1
    %p49 = scmp.ne.s32.totalorder %s44, %s46
    %p50 = scmp.eq.s32.totalorder %s10, 0
    %p51 = por %p49, %p50
    %p52 = scmp.ne.s32.totalorder %s44, %s46
    %p53 = scmp.eq.s32.totalorder %s15, 1
    %p54 = por %p52, %p53
    %p55 = scmp.ne.s32.totalorder %s46, %s47
    %p56 = scmp.eq.s32.totalorder %s15, 0
    %p57 = por %p55, %p56
    %p58 = scmp.ne.s32.totalorder %s46, %s47
    %p59 = scmp.eq.s32.totalorder %s16, 1
    %p60 = por %p58, %p59
    %p62 = scmp.ne.s32.totalorder %s47, %s61
    %p63 = scmp.eq.s32.totalorder %s16, 0
    %p64 = por %p62, %p63
    %s66 = sadd.s32 %s65, 1
    %p69 = scmp.eq.s32.totalorder %s10, 1
    %p70 = scmp.ne.s32.totalorder %s65, %s67
    %p71 = scmp.eq.s32.totalorder %s10, 0
    %p72 = por %p70, %p71
    %p73 = scmp.ne.s32.totalorder %s65, %s67
    %p74 = scmp.eq.s32.totalorder %s15, 1
    %p75 = por %p73, %p74
    %p76 = scmp.ne.s32.totalorder %s67, %s68
    %p77 = scmp.eq.s32.totalorder %s15, 0
    %p78 = por %p76, %p77
    %p79 = scmp.ne.s32.totalorder %s67, %s68
    %p80 = scmp.eq.s32.totalorder %s16, 1
    %p81 = por %p79, %p80
    %p83 = scmp.ne.s32.totalorder %s68, %s82
    %p84 = scmp.eq.s32.totalorder %s16, 0
    %p85 = por %p83, %p84
    %s87 = sadd.s32 %s86, 1
    %p90 = scmp.eq.s32.totalorder %s10, 1
    %p91 = scmp.ne.s32.totalorder %s86, %s88
    %p92 = scmp.eq.s32.totalorder %s10, 0
    %p93 = por %p91, %p92
    %p94 = scmp.ne.s32.totalorder %s86, %s88
    %p95 = scmp.eq.s32.totalorder %s15, 1
    %p96 = por %p94, %p95
    %p97 = scmp.ne.s32.totalorder %s88, %s89
    %p98 = scmp.eq.s32.totalorder %s15, 0
    %p99 = por %p97, %p98
    %p100 = scmp.ne.s32.totalorder %s88, %s89
    %p101 = scmp.eq.s32.totalorder %s16, 1
    %p102 = por %p100, %p101
    %p104 = scmp.ne.s32.totalorder %s89, %s103
    %p105 = scmp.eq.s32.totalorder %s16, 0
    %p106 = por %p104, %p105
    %s107 = ssub.s32 %s10, %s17
    %p108 = scmp.eq.s32.totalorder %s107, 0
    %s110 = sadd.s32 %s109, 1
    %s111 = scalar_select %p108, %s109, %s110
    %p114 = pneg %p108
    %p115 = scmp.eq.s32.totalorder %s10, 1
    %p116 = por %p114, %p115
    %p117 = scmp.ne.s32.totalorder %s109, %s112
    %p118 = scmp.eq.s32.totalorder %s10, 0
    %p119 = por %p117, %p118
    %p120 = scmp.ne.s32.totalorder %s109, %s112
    %p121 = scmp.eq.s32.totalorder %s15, 1
    %p122 = por %p120, %p121
    %p123 = scmp.ne.s32.totalorder %s112, %s113
    %p124 = scmp.eq.s32.totalorder %s15, 0
    %p125 = por %p123, %p124
    %p126 = scmp.ne.s32.totalorder %s112, %s113
    %p127 = scmp.eq.s32.totalorder %s16, 1
    %p128 = por %p126, %p127
    %p130 = scmp.ne.s32.totalorder %s113, %s129
    %p131 = scmp.eq.s32.totalorder %s16, 0
    %p132 = por %p130, %p131
    %p133 = scmp.le.s32.totalorder 1, %s10
    %p134 = scmp.lt.s32.totalorder %s10, 3
    %p135 = pnand %p133, %p134
    %p136 = pneg %p135
    // Predicated region
    $region9: #{mistral_icae_forward.2} parent=5 // pred_check
      _
    $region10: #{mistral_icae_forward.2} parent=5 // pred_check_branch
      %138 = sbr.rel (%p135) target = $region12
    $region11: #{mistral_icae_forward.2} parent=5 // pred_region
      %s139 = ssub.s32 %s10, 1
      // Predicated region
      $region13: #{mistral_icae_forward.2} parent=11 // pred_check
        %p140 = pneg %p57
      $region14: #{mistral_icae_forward.2} parent=11 // pred_check_branch
        %142 = sbr.rel (%p140) target = $region16
      $region15: #{mistral_icae_forward.2} parent=11 // pred_region
        _
      $region16: #{mistral_icae_forward.2} parent=11 // pred_fallthru
        _
      // Predicated region
      $region17: #{mistral_icae_forward.2} parent=11 // pred_check
        %p143 = pneg %p78
      $region18: #{mistral_icae_forward.2} parent=11 // pred_check_branch
        %145 = sbr.rel (%p143) target = $region20
      $region19: #{mistral_icae_forward.2} parent=11 // pred_region
        _
      $region20: #{mistral_icae_forward.2} parent=11 // pred_fallthru
        _
      // Predicated region
      $region21: #{mistral_icae_forward.2} parent=11 // pred_check
        %p146 = pneg %p99
      $region22: #{mistral_icae_forward.2} parent=11 // pred_check_branch
        %148 = sbr.rel (%p146) target = $region24
      $region23: #{mistral_icae_forward.2} parent=11 // pred_region
        _
      $region24: #{mistral_icae_forward.2} parent=11 // pred_fallthru
        _
    $region12: #{mistral_icae_forward.2} parent=5 // pred_fallthru
      _
    %p149 = scmp.lt.s32.totalorder %s10, 2
    // Predicated region
    $region25: #{mistral_icae_forward.2} parent=5 // pred_check
      %p150 = pneg %p149
    $region26: #{mistral_icae_forward.2} parent=5 // pred_check_branch
      %152 = sbr.rel (%p150) target = $region28
    $region27: #{mistral_icae_forward.2} parent=5 // pred_region
      // Predicated region
      $region29: #{mistral_icae_forward.2} parent=27 // pred_check
        %p153 = pneg %p30
      $region30: #{mistral_icae_forward.2} parent=27 // pred_check_branch
        %155 = sbr.rel (%p153) target = $region32
      $region31: #{mistral_icae_forward.2} parent=27 // pred_region
        %s156 = smul.u32 4, %s10
        %p157 = scmp.lt.s32.totalorder %s156, 7
        %s158 = scalar_select %p157, %s156, 7
        %s159 = smul.addr %s158, 4
        %s160 = scalar_lea.vmem %s0, %s159
        %s161 = smul.u32 4, %s10
      $region32: #{mistral_icae_forward.2} parent=27 // pred_fallthru
        _
    $region28: #{mistral_icae_forward.2} parent=5 // pred_fallthru
      _
    %p162 = scmp.le.s32.totalorder 1, %s10
    %p163 = scmp.lt.s32.totalorder %s10, 3
    %p164 = pnand %p162, %p163
    %p165 = pneg %p164
    // Predicated region
    $region33: #{mistral_icae_forward.2} parent=5 // pred_check
      _
    $region34: #{mistral_icae_forward.2} parent=5 // pred_check_branch
      %167 = sbr.rel (%p164) target = $region36
    $region35: #{mistral_icae_forward.2} parent=5 // pred_region
      %s168 = ssub.s32 %s10, 1
      %s169 = smul.u32 4, %s15
      %p170 = scmp.lt.s32.totalorder %s169, 7
      %s171 = scalar_select %p170, %s169, 7
      %s172 = smul.addr %s171, 4
      %s173 = scalar_lea.vmem %s0, %s172
      %p174 = pneg %p36
      %p175 = pneg %p33
      %p176 = pneg %p57
      %p177 = pneg %p54
      %p178 = pneg %p78
      %p179 = pneg %p75
      %p180 = pneg %p99
      %p181 = pneg %p96
      %p182 = pneg %p125
      %p183 = pneg %p122
      %p184 = scmp.lt.s32.totalorder %s15, 1
      %s185 = scalar_select %p184, %s15, 1
      %s186 = smul.addr %s185, 8
      %s187 = scalar_lea.vmem %s4, %s186
      %s188 = smul.u32 4, %s15
      %p189 = scmp.lt.s32.totalorder %s188, 7
      %s190 = scalar_select %p189, %s188, 7
      %s191 = smul.addr %s190, 4
      %s192 = scalar_lea.vmem %s0, %s191
      %s193 = smul.u32 4, %s15
      %p194 = scmp.lt.s32.totalorder %s15, 1
      %s195 = scalar_select %p194, %s15, 1
      %s196 = smul.addr %s195, 8
      %s197 = scalar_lea.vmem %s4, %s196
      %v199 = vld [vmem:[%s192] sm:$0xf]
      %v200 = vld [vmem:[%s192 + $0x4] sm:$0xf]
      %v201 = vld [vmem:[%s192 + $0x8] sm:$0xf]
      %v202 = vld [vmem:[%s192 + $0xc] sm:$0xf]
      %v203 = vld [vmem:[%s1] sm:$0xff]
      %v204 = vld [vmem:[%s1 + $0x8] sm:$0xff]
      %v205 = vld [vmem:[%s1 + $0x10] sm:$0xff]
      %v206 = vld [vmem:[%s1 + $0x18] sm:$0xff]
      %v207 = vld [vmem:[%s1 + $0x20] sm:$0xff]
      %v208 = vld [vmem:[%s1 + $0x28] sm:$0xff]
      %v209 = vld [vmem:[%s1 + $0x30] sm:$0xff]
      %v210 = vld [vmem:[%s1 + $0x38] sm:$0xff]
      %v211 = vld [vmem:[%s1 + $0x40] sm:$0xff]
      %v212 = vld [vmem:[%s1 + $0x48] sm:$0xff]
      %v213 = vld [vmem:[%s1 + $0x50] sm:$0xff]
      %v214 = vld [vmem:[%s1 + $0x58] sm:$0xff]
      %v215 = vld [vmem:[%s1 + $0x60] sm:$0xff]
      %v216 = vld [vmem:[%s1 + $0x68] sm:$0xff]
      %v217 = vld [vmem:[%s1 + $0x70] sm:$0xff]
      %v218 = vld [vmem:[%s1 + $0x78] sm:$0xff]
      %v219 = vld [vmem:[%s2] sm:$0x3]
      %v220 = vunpack.c.l.bf16 %v219
      %v222 = vlaneseq
      %v223 = vshrl.u32 %v222, 7
      %v224 = vsub.s32 0, %v223
      %v225 = vrot.slane %v220, %v224
      %v226 = vlaneseq
      %v227 = vshrl.u32 %v226, 7
      %v228 = vsub.s32 2, %v227
      %v229 = vrot.slane %v220, %v228
      %v232 = vlaneseq
      %v233 = vshrl.u32 %v232, 7
      %v234 = vsub.s32 0, %v233
      %v235 = vrot.slane %v225, %v234
      %v236 = vlaneseq
      %v237 = vshrl.u32 %v236, 7
      %v238 = vsub.s32 0, %v237
      %v239 = vrot.slane %v229, %v238
      %v244 = vunpack.c.l.b16 %v199
      %v245 = vunpack.c.l.b16 %v200
      %v246 = vunpack.c.l.b16 %v201
      %v247 = vunpack.c.l.b16 %v202
      %v248 = vpack.c.b16 %v245, %v244
      %v249 = vpack.c.b16 %v247, %v246
      %v268 = vunpack.c.l.b16 %v203
      %v269 = vunpack.c.h.b16 %v203
      %v270 = vunpack.c.l.b16 %v204
      %v271 = vunpack.c.h.b16 %v204
      %v272 = vunpack.c.l.b16 %v205
      %v273 = vunpack.c.h.b16 %v205
      %v274 = vunpack.c.l.b16 %v206
      %v275 = vunpack.c.h.b16 %v206
      %v276 = vunpack.c.l.b16 %v207
      %v277 = vunpack.c.h.b16 %v207
      %v278 = vunpack.c.l.b16 %v208
      %v279 = vunpack.c.h.b16 %v208
      %v280 = vunpack.c.l.b16 %v209
      %v281 = vunpack.c.h.b16 %v209
      %v282 = vunpack.c.l.b16 %v210
      %v283 = vunpack.c.h.b16 %v210
      %v284 = vunpack.c.l.b16 %v211
      %v285 = vunpack.c.h.b16 %v211
      %v286 = vunpack.c.l.b16 %v212
      %v287 = vunpack.c.h.b16 %v212
      %v288 = vunpack.c.l.b16 %v213
      %v289 = vunpack.c.h.b16 %v213
      %v290 = vunpack.c.l.b16 %v214
      %v291 = vunpack.c.h.b16 %v214
      %v292 = vunpack.c.l.b16 %v215
      %v293 = vunpack.c.h.b16 %v215
      %v294 = vunpack.c.l.b16 %v216
      %v295 = vunpack.c.h.b16 %v216
      %v296 = vunpack.c.l.b16 %v217
      %v297 = vunpack.c.h.b16 %v217
      %v298 = vunpack.c.l.b16 %v218
      %v299 = vunpack.c.h.b16 %v218
      %v300 = vpack.c.b16 %v270, %v268
      %v301 = vpack.c.b16 %v271, %v269
      %v302 = vpack.c.b16 %v274, %v272
      %v303 = vpack.c.b16 %v275, %v273
      %v304 = vpack.c.b16 %v278, %v276
      %v305 = vpack.c.b16 %v279, %v277
      %v306 = vpack.c.b16 %v282, %v280
      %v307 = vpack.c.b16 %v283, %v281
      %v308 = vpack.c.b16 %v286, %v284
      %v309 = vpack.c.b16 %v287, %v285
      %v310 = vpack.c.b16 %v290, %v288
      %v311 = vpack.c.b16 %v291, %v289
      %v312 = vpack.c.b16 %v294, %v292
      %v313 = vpack.c.b16 %v295, %v293
      %v314 = vpack.c.b16 %v298, %v296
      %v315 = vpack.c.b16 %v299, %v297
      %332 = vmatprep.subr.bf16.mxu0 %v315
      %333 = vmatpush1.bf16.msra.mxu0 %v314
      %334 = vmatprep.subr.bf16.mxu0 %v313
      %335 = vmatpush1.bf16.msra.mxu0 %v312
      %336 = vmatprep.subr.bf16.mxu0 %v311
      %337 = vmatpush1.bf16.msra.mxu0 %v310
      %338 = vmatprep.subr.bf16.mxu0 %v309
      %339 = vmatpush1.bf16.msra.mxu0 %v308
      %340 = vmatprep.subr.bf16.mxu0 %v307
      %341 = vmatpush1.bf16.msra.mxu0 %v306
      %342 = vmatprep.subr.bf16.mxu0 %v305
      %343 = vmatpush1.bf16.msra.mxu0 %v304
      %344 = vmatprep.subr.bf16.mxu0 %v303
      %345 = vmatpush1.bf16.msra.mxu0 %v302
      %346 = vmatprep.subr.bf16.mxu0 %v301
      %347 = vmatpush1.bf16.msra.mxu0 %v300
      %348 = vmatprep.subr.bf16.mxu0 0
      %349 = vmatpush2.bf16.msra.mxu0 0
      %350 = vmatprep.subr.bf16.mxu0 0
      %351 = vmatpush2.bf16.msra.mxu0 0
      %352 = vmatprep.subr.bf16.mxu0 0
      %353 = vmatpush2.bf16.msra.mxu0 0
      %354 = vmatprep.subr.bf16.mxu0 0
      %355 = vmatpush2.bf16.msra.mxu0 0
      %356 = vmatprep.subr.bf16.mxu0 0
      %357 = vmatpush2.bf16.msra.mxu0 0
      %358 = vmatprep.subr.bf16.mxu0 0
      %359 = vmatpush2.bf16.msra.mxu0 0
      %360 = vmatprep.subr.bf16.mxu0 0
      %361 = vmatpush2.bf16.msra.mxu0 0
      %362 = vmatprep.subr.bf16.mxu0 0
      %363 = vmatpush2.bf16.msra.mxu0 0
      %364 = vmatprep.mubr.bf16.mxu0 0
      %365 = vmatmul.mubr.bf16.gmra.mxu0 %v248
      %v366 = vpop.f32.mrf.mxu0
      %v367 = vadd.f32 %v235, %v366
      %v368 = vpop.f32.mrf.mxu0
      %v369 = vadd.f32 %v239, %v368
      %v370 = vpop.f32.mrf.mxu0
      %v371 = vadd.f32 %v235, %v370
      %v372 = vpop.f32.mrf.mxu0
      %v373 = vadd.f32 %v239, %v372
      %374 = vmatprep.mubr.bf16.mxu0 0
      %375 = vmatmul.mubr.bf16.gmra.mxu0 %v249
      %v376 = vpop.f32.mrf.mxu0
      %v377 = vadd.f32 %v235, %v376
      %v378 = vpop.f32.mrf.mxu0
      %v379 = vadd.f32 %v239, %v378
      %v380 = vpop.f32.mrf.mxu0
      %v381 = vadd.f32 %v235, %v380
      %v382 = vpop.f32.mrf.mxu0
      %v383 = vadd.f32 %v239, %v382
      %384 = vdwg.mxu0
      %v385 = vmul.f32 %v367, %v367
      %v386 = vmul.f32 %v369, %v369
      %v387 = vmul.f32 %v371, %v371
      %v388 = vmul.f32 %v373, %v373
      %v389 = vmul.f32 %v377, %v377
      %v390 = vmul.f32 %v379, %v379
      %v391 = vmul.f32 %v381, %v381
      %v392 = vmul.f32 %v383, %v383
      %v393 = vmul.f32 %v367, %v385
      %v394 = vmul.f32 %v369, %v386
      %v395 = vmul.f32 %v371, %v387
      %v396 = vmul.f32 %v373, %v388
      %v397 = vmul.f32 %v377, %v389
      %v398 = vmul.f32 %v379, %v390
      %v399 = vmul.f32 %v381, %v391
      %v400 = vmul.f32 %v383, %v392
      %v401 = vmul.f32 %v393, 0.044715
      %v402 = vmul.f32 %v394, 0.044715
      %v403 = vmul.f32 %v395, 0.044715
      %v404 = vmul.f32 %v396, 0.044715
      %v405 = vmul.f32 %v397, 0.044715
      %v406 = vmul.f32 %v398, 0.044715
      %v407 = vmul.f32 %v399, 0.044715
      %v408 = vmul.f32 %v400, 0.044715
      %v409 = vadd.f32 %v367, %v401
      %v410 = vadd.f32 %v369, %v402
      %v411 = vadd.f32 %v371, %v403
      %v412 = vadd.f32 %v373, %v404
      %v413 = vadd.f32 %v377, %v405
      %v414 = vadd.f32 %v379, %v406
      %v415 = vadd.f32 %v381, %v407
      %v416 = vadd.f32 %v383, %v408
      %v417 = vmul.f32 %v409, 0.7978846
      %v418 = vmul.f32 %v410, 0.7978846
      %v419 = vmul.f32 %v411, 0.7978846
      %v420 = vmul.f32 %v412, 0.7978846
      %v421 = vmul.f32 %v413, 0.7978846
      %v422 = vmul.f32 %v414, 0.7978846
      %v423 = vmul.f32 %v415, 0.7978846
      %v424 = vmul.f32 %v416, 0.7978846
      %v425 = vtanh.pop %v417
      %v426 = vtanh.pop %v418
      %v427 = vtanh.pop %v419
      %v428 = vtanh.pop %v420
      %v429 = vtanh.pop %v421
      %v430 = vtanh.pop %v422
      %v431 = vtanh.pop %v423
      %v432 = vtanh.pop %v424
      %v433 = vadd.f32 %v425, 1.0
      %v434 = vadd.f32 %v426, 1.0
      %v435 = vadd.f32 %v427, 1.0
      %v436 = vadd.f32 %v428, 1.0
      %v437 = vadd.f32 %v429, 1.0
      %v438 = vadd.f32 %v430, 1.0
      %v439 = vadd.f32 %v431, 1.0
      %v440 = vadd.f32 %v432, 1.0
      %v441 = vmul.f32 %v433, 0.5
      %v442 = vmul.f32 %v434, 0.5
      %v443 = vmul.f32 %v435, 0.5
      %v444 = vmul.f32 %v436, 0.5
      %v445 = vmul.f32 %v437, 0.5
      %v446 = vmul.f32 %v438, 0.5
      %v447 = vmul.f32 %v439, 0.5
      %v448 = vmul.f32 %v440, 0.5
      %v449 = vmul.f32 %v367, %v441
      %v450 = vmul.f32 %v369, %v442
      %v451 = vmul.f32 %v371, %v443
      %v452 = vmul.f32 %v373, %v444
      %v453 = vmul.f32 %v377, %v445
      %v454 = vmul.f32 %v379, %v446
      %v455 = vmul.f32 %v381, %v447
      %v456 = vmul.f32 %v383, %v448
      %v457 = vpack.c.bf16 %v451, %v449
      %v458 = vpack.c.bf16 %v452, %v450
      %v459 = vpack.c.bf16 %v455, %v453
      %v460 = vpack.c.bf16 %v456, %v454
      %v461 = vld [vmem:[%s3] sm:$0xf]
      %v462 = vld [vmem:[%s3 + $0x4] sm:$0xf]
      %v463 = vld [vmem:[%s3 + $0x8] sm:$0xf]
      %v464 = vld [vmem:[%s3 + $0xc] sm:$0xf]
      %v465 = vld [vmem:[%s3 + $0x10] sm:$0xf]
      %v466 = vld [vmem:[%s3 + $0x14] sm:$0xf]
      %v467 = vld [vmem:[%s3 + $0x18] sm:$0xf]
      %v468 = vld [vmem:[%s3 + $0x1c] sm:$0xf]
      %v469 = vld [vmem:[%s3 + $0x20] sm:$0xf]
      %v470 = vld [vmem:[%s3 + $0x24] sm:$0xf]
      %v471 = vld [vmem:[%s3 + $0x28] sm:$0xf]
      %v472 = vld [vmem:[%s3 + $0x2c] sm:$0xf]
      %v473 = vld [vmem:[%s3 + $0x30] sm:$0xf]
      %v474 = vld [vmem:[%s3 + $0x34] sm:$0xf]
      %v475 = vld [vmem:[%s3 + $0x38] sm:$0xf]
      %v476 = vld [vmem:[%s3 + $0x3c] sm:$0xf]
      %v477 = vld [vmem:[%s3 + $0x40] sm:$0xf]
      %v478 = vld [vmem:[%s3 + $0x44] sm:$0xf]
      %v479 = vld [vmem:[%s3 + $0x48] sm:$0xf]
      %v480 = vld [vmem:[%s3 + $0x4c] sm:$0xf]
      %v481 = vld [vmem:[%s3 + $0x50] sm:$0xf]
      %v482 = vld [vmem:[%s3 + $0x54] sm:$0xf]
      %v483 = vld [vmem:[%s3 + $0x58] sm:$0xf]
      %v484 = vld [vmem:[%s3 + $0x5c] sm:$0xf]
      %v485 = vld [vmem:[%s3 + $0x60] sm:$0xf]
      %v486 = vld [vmem:[%s3 + $0x64] sm:$0xf]
      %v487 = vld [vmem:[%s3 + $0x68] sm:$0xf]
      %v488 = vld [vmem:[%s3 + $0x6c] sm:$0xf]
      %v489 = vld [vmem:[%s3 + $0x70] sm:$0xf]
      %v490 = vld [vmem:[%s3 + $0x74] sm:$0xf]
      %v491 = vld [vmem:[%s3 + $0x78] sm:$0xf]
      %v492 = vld [vmem:[%s3 + $0x7c] sm:$0xf]
      %v525 = vunpack.c.l.b16 %v461
      %v526 = vunpack.c.l.b16 %v462
      %v527 = vunpack.c.l.b16 %v463
      %v528 = vunpack.c.l.b16 %v464
      %v529 = vunpack.c.l.b16 %v465
      %v530 = vunpack.c.l.b16 %v466
      %v531 = vunpack.c.l.b16 %v467
      %v532 = vunpack.c.l.b16 %v468
      %v533 = vunpack.c.l.b16 %v469
      %v534 = vunpack.c.l.b16 %v470
      %v535 = vunpack.c.l.b16 %v471
      %v536 = vunpack.c.l.b16 %v472
      %v537 = vunpack.c.l.b16 %v473
      %v538 = vunpack.c.l.b16 %v474
      %v539 = vunpack.c.l.b16 %v475
      %v540 = vunpack.c.l.b16 %v476
      %v541 = vunpack.c.l.b16 %v477
      %v542 = vunpack.c.l.b16 %v478
      %v543 = vunpack.c.l.b16 %v479
      %v544 = vunpack.c.l.b16 %v480
      %v545 = vunpack.c.l.b16 %v481
      %v546 = vunpack.c.l.b16 %v482
      %v547 = vunpack.c.l.b16 %v483
      %v548 = vunpack.c.l.b16 %v484
      %v549 = vunpack.c.l.b16 %v485
      %v550 = vunpack.c.l.b16 %v486
      %v551 = vunpack.c.l.b16 %v487
      %v552 = vunpack.c.l.b16 %v488
      %v553 = vunpack.c.l.b16 %v489
      %v554 = vunpack.c.l.b16 %v490
      %v555 = vunpack.c.l.b16 %v491
      %v556 = vunpack.c.l.b16 %v492
      %v557 = vpack.c.b16 %v526, %v525
      %v558 = vpack.c.b16 %v528, %v527
      %v559 = vpack.c.b16 %v530, %v529
      %v560 = vpack.c.b16 %v532, %v531
      %v561 = vpack.c.b16 %v534, %v533
      %v562 = vpack.c.b16 %v536, %v535
      %v563 = vpack.c.b16 %v538, %v537
      %v564 = vpack.c.b16 %v540, %v539
      %v565 = vpack.c.b16 %v542, %v541
      %v566 = vpack.c.b16 %v544, %v543
      %v567 = vpack.c.b16 %v546, %v545
      %v568 = vpack.c.b16 %v548, %v547
      %v569 = vpack.c.b16 %v550, %v549
      %v570 = vpack.c.b16 %v552, %v551
      %v571 = vpack.c.b16 %v554, %v553
      %v572 = vpack.c.b16 %v556, %v555
      %589 = vmatprep.subr.bf16.mxu0 0
      %590 = vmatpush1.bf16.msra.mxu0 %v564
      %591 = vmatprep.subr.bf16.mxu0 0
      %592 = vmatpush1.bf16.msra.mxu0 %v563
      %593 = vmatprep.subr.bf16.mxu0 0
      %594 = vmatpush1.bf16.msra.mxu0 %v562
      %595 = vmatprep.subr.bf16.mxu0 0
      %596 = vmatpush1.bf16.msra.mxu0 %v561
      %597 = vmatprep.subr.bf16.mxu0 0
      %598 = vmatpush1.bf16.msra.mxu0 %v560
      %599 = vmatprep.subr.bf16.mxu0 0
      %600 = vmatpush1.bf16.msra.mxu0 %v559
      %601 = vmatprep.subr.bf16.mxu0 0
      %602 = vmatpush1.bf16.msra.mxu0 %v558
      %603 = vmatprep.subr.bf16.mxu0 0
      %604 = vmatpush1.bf16.msra.mxu0 %v557
      %605 = vmatprep.subr.bf16.mxu0 0
      %606 = vmatpush2.bf16.msra.mxu0 %v572
      %607 = vmatprep.subr.bf16.mxu0 0
      %608 = vmatpush2.bf16.msra.mxu0 %v571
      %609 = vmatprep.subr.bf16.mxu0 0
      %610 = vmatpush2.bf16.msra.mxu0 %v570
      %611 = vmatprep.subr.bf16.mxu0 0
      %612 = vmatpush2.bf16.msra.mxu0 %v569
      %613 = vmatprep.subr.bf16.mxu0 0
      %614 = vmatpush2.bf16.msra.mxu0 %v568
      %615 = vmatprep.subr.bf16.mxu0 0
      %616 = vmatpush2.bf16.msra.mxu0 %v567
      %617 = vmatprep.subr.bf16.mxu0 0
      %618 = vmatpush2.bf16.msra.mxu0 %v566
      %619 = vmatprep.subr.bf16.mxu0 0
      %620 = vmatpush2.bf16.msra.mxu0 %v565
      %621 = vmatprep.mubr.bf16.mxu0 %v458
      %622 = vmatmul.mubr.bf16.gmra.mxu0 %v457
      %v623 = vpop.f32.mrf.mxu0
      %v624 = vpop.f32.mrf.mxu0
      %v625 = vpop.f32.mrf.mxu0
      %v626 = vpop.f32.mrf.mxu0
      %627 = vmatprep.mubr.bf16.mxu0 %v460
      %628 = vmatmul.mubr.bf16.gmra.mxu0 %v459
      %v629 = vpop.f32.mrf.mxu0
      %v630 = vpop.f32.mrf.mxu0
      %v631 = vpop.f32.mrf.mxu0
      %v632 = vadd.f32 0.0, %v631
      %v633 = vpop.f32.mrf.mxu0
      %634 = vdwg.mxu0
      %v635 = vunpack.c.l.bf16 %v202
      %v636 = vadd.f32 %v635, %v632
      %637 = vst [vmem:[%s197] sm:$0xff] %v636
      %p638 = scmp.lt.s32.totalorder %s15, 1
      %s639 = scalar_select %p638, %s15, 1
      %s640 = smul.addr %s639, 8
      %s641 = scalar_lea.vmem %s4, %s640
      // Predicated region
      $region37: #{mistral_icae_forward.2} parent=35 // pred_check
        %p642 = pneg %p122
      $region38: #{mistral_icae_forward.2} parent=35 // pred_check_branch
        %644 = sbr.rel (%p642) target = $region40
      $region39: #{mistral_icae_forward.2} parent=35 // pred_region
        _
      $region40: #{mistral_icae_forward.2} parent=35 // pred_fallthru
        _
    $region36: #{mistral_icae_forward.2} parent=5 // pred_fallthru
      _
    %p645 = scmp.le.s32.totalorder 2, %s10
    // Predicated region
    $region41: #{mistral_icae_forward.2} parent=5 // pred_check
      %p646 = pneg %p645
    $region42: #{mistral_icae_forward.2} parent=5 // pred_check_branch
      %648 = sbr.rel (%p646) target = $region44
    $region43: #{mistral_icae_forward.2} parent=5 // pred_region
      %s649 = ssub.s32 %s10, 2
      // Predicated region
      $region45: #{mistral_icae_forward.2} parent=43 // pred_check
        %p650 = pneg %p128
      $region46: #{mistral_icae_forward.2} parent=43 // pred_check_branch
        %652 = sbr.rel (%p650) target = $region48
      $region47: #{mistral_icae_forward.2} parent=43 // pred_region
        %p653 = scmp.lt.s32.totalorder %s16, 1
        %s654 = scalar_select %p653, %s16, 1
        %s655 = smul.addr %s654, 8
        %s656 = scalar_lea.vmem %s4, %s655
      $region48: #{mistral_icae_forward.2} parent=43 // pred_fallthru
        _
    $region44: #{mistral_icae_forward.2} parent=5 // pred_fallthru
      _
  $region6: #{mistral_icae_forward.2} parent=0 // loop_footer
    %s14 = sadd.s32 1, %s10
  $region7: #{mistral_icae_forward.2} parent=0 // loop_footer_branch
    %9 = sbr.rel target = $region3
  $region8: #{mistral_icae_forward.2} parent=0 // loop_exit
    _

// kernel: mistral_icae_forward.3
$region0: #{mistral_icae_forward.3}
  #allocation0 [shape = 'u32[]', space=smem, size = 0x4, offset = 0x4, fixed_abs, tag = 'smem constant byte address 0x4 - core index']
  #allocation1 [shape = 'u32[144,128]{1,0:T(1,128)}', space=vmem, size = 0x12000, scoped, tag = 'internal scratch']
  #allocation2 [shape = 'bf16[16,128]{1,0:T(8,128)(2,1)}', space=vmem, size = 0x1000, scoped, tag = 'scratch operand']
  #allocation3 [shape = 'f32[16,1]{1,0:T(8,128)}', space=vmem, size = 0x2000, scoped, tag = 'scratch operand']
  #allocation4 [shape = 'f32[16,1]{1,0:T(8,128)}', space=vmem, size = 0x2000, scoped, tag = 'scratch operand']
  #allocation5 [shape = 'f32[16,1]{1,0:T(8,128)}', space=vmem, size = 0x2000, scoped, tag = 'scratch operand']
  %s0 = inlined_call_operand.vmem [shape: bf16[16,128], index: 0, kind: input, shape index: {}]
  %s1 = inlined_call_operand.vmem [shape: bf16[128,256], index: 1, kind: input, shape index: {}]
  %s2 = inlined_call_operand.vmem [shape: bf16[1,256], index: 2, kind: input, shape index: {}]
  %s3 = inlined_call_operand.vmem [shape: bf16[256,128], index: 3, kind: input, shape index: {}]
  %s4 = inlined_call_operand.vmem [shape: bf16[128,256], index: 4, kind: input, shape index: {}]
  %s5 = inlined_call_operand.vmem [shape: s32[16,1], index: 5, kind: input, shape index: {}]
  %s6 = inlined_call_operand.vmem [shape: bf16[16,256], index: 6, kind: output, shape index: {0}]
  %s7 = inlined_call_operand.vmem [shape: f32[16,1], index: 7, kind: output, shape index: {1}]
  %8 = xla_tuple %s6, %s7
  %s9 = sld [smem:[#allocation0]]
  $region50: #{mistral_icae_forward.3} parent=0
    _
  %s11 = ssub.s32 1, %s9
  %s12 = scalar_select 0, %s11, %s9
  // Predicated region
  $region2: #{mistral_icae_forward.3} parent=0 // pred_check
    _
  $region3: #{mistral_icae_forward.3} parent=0 // pred_check_branch
    %14 = sbr.rel (0) target = $region5
  $region4: #{mistral_icae_forward.3} parent=0 // pred_region
    _
  $region5: #{mistral_icae_forward.3} parent=0 // pred_fallthru
    _
  // Predicated region
  $region6: #{mistral_icae_forward.3} parent=0 // pred_check
    _
  $region7: #{mistral_icae_forward.3} parent=0 // pred_check_branch
    %16 = sbr.rel (0) target = $region9
  $region8: #{mistral_icae_forward.3} parent=0 // pred_region
    _
  $region9: #{mistral_icae_forward.3} parent=0 // pred_fallthru
    _
  // Predicated region
  $region10: #{mistral_icae_forward.3} parent=0 // pred_check
    _
  $region11: #{mistral_icae_forward.3} parent=0 // pred_check_branch
    %18 = sbr.rel (0) target = $region13
  $region12: #{mistral_icae_forward.3} parent=0 // pred_region
    _
  $region13: #{mistral_icae_forward.3} parent=0 // pred_fallthru
    _
  // Predicated region
  $region14: #{mistral_icae_forward.3} parent=0 // pred_check
    _
  $region15: #{mistral_icae_forward.3} parent=0 // pred_check_branch
    %20 = sbr.rel (0) target = $region17
  $region16: #{mistral_icae_forward.3} parent=0 // pred_region
    _
  $region17: #{mistral_icae_forward.3} parent=0 // pred_fallthru
    _
  // Predicated region
  $region18: #{mistral_icae_forward.3} parent=0 // pred_check
    _
  $region19: #{mistral_icae_forward.3} parent=0 // pred_check_branch
    %22 = sbr.rel (0) target = $region21
  $region20: #{mistral_icae_forward.3} parent=0 // pred_region
    _
  $region21: #{mistral_icae_forward.3} parent=0 // pred_fallthru
    _
  // Predicated region
  $region22: #{mistral_icae_forward.3} parent=0 // pred_check
    _
  $region23: #{mistral_icae_forward.3} parent=0 // pred_check_branch
    %24 = sbr.rel (0) target = $region25
  $region24: #{mistral_icae_forward.3} parent=0 // pred_region
    _
  $region25: #{mistral_icae_forward.3} parent=0 // pred_fallthru
    _
  %p26 = scmp.eq.s32.totalorder 0, 0
  // Predicated region
  $region26: #{mistral_icae_forward.3} parent=0 // pred_check
    %p27 = pneg %p26
  $region27: #{mistral_icae_forward.3} parent=0 // pred_check_branch
    %29 = sbr.rel (%p27) target = $region29
  $region28: #{mistral_icae_forward.3} parent=0 // pred_region
    %v30 = vld [vmem:[%s0] sm:$0xf]
    %v31 = vld [vmem:[%s0 + $0x4] sm:$0xf]
    %v32 = vld [vmem:[%s1] sm:$0xff]
    %v33 = vld [vmem:[%s1 + $0x8] sm:$0xff]
    %v34 = vld [vmem:[%s1 + $0x10] sm:$0xff]
    %v35 = vld [vmem:[%s1 + $0x18] sm:$0xff]
    %v36 = vld [vmem:[%s1 + $0x20] sm:$0xff]
    %v37 = vld [vmem:[%s1 + $0x28] sm:$0xff]
    %v38 = vld [vmem:[%s1 + $0x30] sm:$0xff]
    %v39 = vld [vmem:[%s1 + $0x38] sm:$0xff]
    %v40 = vld [vmem:[%s1 + $0x40] sm:$0xff]
    %v41 = vld [vmem:[%s1 + $0x48] sm:$0xff]
    %v42 = vld [vmem:[%s1 + $0x50] sm:$0xff]
    %v43 = vld [vmem:[%s1 + $0x58] sm:$0xff]
    %v44 = vld [vmem:[%s1 + $0x60] sm:$0xff]
    %v45 = vld [vmem:[%s1 + $0x68] sm:$0xff]
    %v46 = vld [vmem:[%s1 + $0x70] sm:$0xff]
    %v47 = vld [vmem:[%s1 + $0x78] sm:$0xff]
    %v48 = vld [vmem:[%s2] sm:$0x3]
    %v49 = vunpack.c.l.bf16 %v48
    %v51 = vlaneseq
    %v52 = vshrl.u32 %v51, 7
    %v53 = vsub.s32 0, %v52
    %v54 = vrot.slane %v49, %v53
    %v55 = vlaneseq
    %v56 = vshrl.u32 %v55, 7
    %v57 = vsub.s32 2, %v56
    %v58 = vrot.slane %v49, %v57
    %v61 = vlaneseq
    %v62 = vshrl.u32 %v61, 7
    %v63 = vsub.s32 0, %v62
    %v64 = vrot.slane %v54, %v63
    %v65 = vlaneseq
    %v66 = vshrl.u32 %v65, 7
    %v67 = vsub.s32 0, %v66
    %v68 = vrot.slane %v58, %v67
    %v71 = vunpack.c.l.b16 %v30
    %v72 = vunpack.c.l.b16 %v31
    %v73 = vpack.c.b16 %v72, %v71
    %v91 = vunpack.c.l.b16 %v32
    %v92 = vunpack.c.h.b16 %v32
    %v93 = vunpack.c.l.b16 %v33
    %v94 = vunpack.c.h.b16 %v33
    %v95 = vunpack.c.l.b16 %v34
    %v96 = vunpack.c.h.b16 %v34
    %v97 = vunpack.c.l.b16 %v35
    %v98 = vunpack.c.h.b16 %v35
    %v99 = vunpack.c.l.b16 %v36
    %v100 = vunpack.c.h.b16 %v36
    %v101 = vunpack.c.l.b16 %v37
    %v102 = vunpack.c.h.b16 %v37
    %v103 = vunpack.c.l.b16 %v38
    %v104 = vunpack.c.h.b16 %v38
    %v105 = vunpack.c.l.b16 %v39
    %v106 = vunpack.c.h.b16 %v39
    %v107 = vunpack.c.l.b16 %v40
    %v108 = vunpack.c.h.b16 %v40
    %v109 = vunpack.c.l.b16 %v41
    %v110 = vunpack.c.h.b16 %v41
    %v111 = vunpack.c.l.b16 %v42
    %v112 = vunpack.c.h.b16 %v42
    %v113 = vunpack.c.l.b16 %v43
    %v114 = vunpack.c.h.b16 %v43
    %v115 = vunpack.c.l.b16 %v44
    %v116 = vunpack.c.h.b16 %v44
    %v117 = vunpack.c.l.b16 %v45
    %v118 = vunpack.c.h.b16 %v45
    %v119 = vunpack.c.l.b16 %v46
    %v120 = vunpack.c.h.b16 %v46
    %v121 = vunpack.c.l.b16 %v47
    %v122 = vunpack.c.h.b16 %v47
    %v123 = vpack.c.b16 %v93, %v91
    %v124 = vpack.c.b16 %v94, %v92
    %v125 = vpack.c.b16 %v97, %v95
    %v126 = vpack.c.b16 %v98, %v96
    %v127 = vpack.c.b16 %v101, %v99
    %v128 = vpack.c.b16 %v102, %v100
    %v129 = vpack.c.b16 %v105, %v103
    %v130 = vpack.c.b16 %v106, %v104
    %v131 = vpack.c.b16 %v109, %v107
    %v132 = vpack.c.b16 %v110, %v108
    %v133 = vpack.c.b16 %v113, %v111
    %v134 = vpack.c.b16 %v114, %v112
    %v135 = vpack.c.b16 %v117, %v115
    %v136 = vpack.c.b16 %v118, %v116
    %v137 = vpack.c.b16 %v121, %v119
    %v138 = vpack.c.b16 %v122, %v120
    %155 = vmatprep.subr.bf16.mxu0 %v138
    %156 = vmatpush1.bf16.msra.mxu0 %v137
    %157 = vmatprep.subr.bf16.mxu0 %v136
    %158 = vmatpush1.bf16.msra.mxu0 %v135
    %159 = vmatprep.subr.bf16.mxu0 %v134
    %160 = vmatpush1.bf16.msra.mxu0 %v133
    %161 = vmatprep.subr.bf16.mxu0 %v132
    %162 = vmatpush1.bf16.msra.mxu0 %v131
    %163 = vmatprep.subr.bf16.mxu0 %v130
    %164 = vmatpush1.bf16.msra.mxu0 %v129
    %165 = vmatprep.subr.bf16.mxu0 %v128
    %166 = vmatpush1.bf16.msra.mxu0 %v127
    %167 = vmatprep.subr.bf16.mxu0 %v126
    %168 = vmatpush1.bf16.msra.mxu0 %v125
    %169 = vmatprep.subr.bf16.mxu0 %v124
    %170 = vmatpush1.bf16.msra.mxu0 %v123
    %171 = vmatprep.subr.bf16.mxu0 0
    %172 = vmatpush2.bf16.msra.mxu0 0
    %173 = vmatprep.subr.bf16.mxu0 0
    %174 = vmatpush2.bf16.msra.mxu0 0
    %175 = vmatprep.subr.bf16.mxu0 0
    %176 = vmatpush2.bf16.msra.mxu0 0
    %177 = vmatprep.subr.bf16.mxu0 0
    %178 = vmatpush2.bf16.msra.mxu0 0
    %179 = vmatprep.subr.bf16.mxu0 0
    %180 = vmatpush2.bf16.msra.mxu0 0
    %181 = vmatprep.subr.bf16.mxu0 0
    %182 = vmatpush2.bf16.msra.mxu0 0
    %183 = vmatprep.subr.bf16.mxu0 0
    %184 = vmatpush2.bf16.msra.mxu0 0
    %185 = vmatprep.subr.bf16.mxu0 0
    %186 = vmatpush2.bf16.msra.mxu0 0
    %187 = vmatprep.mubr.bf16.mxu0 0
    %188 = vmatmul.mubr.bf16.gmra.mxu0 %v73
    %v189 = vpop.f32.mrf.mxu0
    %v190 = vadd.f32 %v64, %v189
    %v191 = vpop.f32.mrf.mxu0
    %v192 = vadd.f32 %v68, %v191
    %v193 = vpop.f32.mrf.mxu0
    %v194 = vadd.f32 %v64, %v193
    %v195 = vpop.f32.mrf.mxu0
    %v196 = vadd.f32 %v68, %v195
    %197 = vdwg.mxu0
    %v198 = vmul.f32 %v190, %v190
    %v199 = vmul.f32 %v192, %v192
    %v200 = vmul.f32 %v194, %v194
    %v201 = vmul.f32 %v196, %v196
    %v202 = vmul.f32 %v190, %v198
    %v203 = vmul.f32 %v192, %v199
    %v204 = vmul.f32 %v194, %v200
    %v205 = vmul.f32 %v196, %v201
    %v206 = vmul.f32 %v202, 0.044715
    %v207 = vmul.f32 %v203, 0.044715
    %v208 = vmul.f32 %v204, 0.044715
    %v209 = vmul.f32 %v205, 0.044715
    %v210 = vadd.f32 %v190, %v206
    %v211 = vadd.f32 %v192, %v207
    %v212 = vadd.f32 %v194, %v208
    %v213 = vadd.f32 %v196, %v209
    %v214 = vmul.f32 %v210, 0.7978846
    %v215 = vmul.f32 %v211, 0.7978846
    %v216 = vmul.f32 %v212, 0.7978846
    %v217 = vmul.f32 %v213, 0.7978846
    %v218 = vtanh.pop %v214
    %v219 = vtanh.pop %v215
    %v220 = vtanh.pop %v216
    %v221 = vtanh.pop %v217
    %v222 = vadd.f32 %v218, 1.0
    %v223 = vadd.f32 %v219, 1.0
    %v224 = vadd.f32 %v220, 1.0
    %v225 = vadd.f32 %v221, 1.0
    %v226 = vmul.f32 %v222, 0.5
    %v227 = vmul.f32 %v223, 0.5
    %v228 = vmul.f32 %v224, 0.5
    %v229 = vmul.f32 %v225, 0.5
    %v230 = vmul.f32 %v190, %v226
    %v231 = vmul.f32 %v192, %v227
    %v232 = vmul.f32 %v194, %v228
    %v233 = vmul.f32 %v196, %v229
    %v234 = vpack.c.bf16 %v232, %v230
    %v235 = vpack.c.bf16 %v233, %v231
    %v236 = vld [vmem:[%s3] sm:$0xf]
    %v237 = vld [vmem:[%s3 + $0x4] sm:$0xf]
    %v238 = vld [vmem:[%s3 + $0x8] sm:$0xf]
    %v239 = vld [vmem:[%s3 + $0xc] sm:$0xf]
    %v240 = vld [vmem:[%s3 + $0x10] sm:$0xf]
    %v241 = vld [vmem:[%s3 + $0x14] sm:$0xf]
    %v242 = vld [vmem:[%s3 + $0x18] sm:$0xf]
    %v243 = vld [vmem:[%s3 + $0x1c] sm:$0xf]
    %v244 = vld [vmem:[%s3 + $0x20] sm:$0xf]
    %v245 = vld [vmem:[%s3 + $0x24] sm:$0xf]
    %v246 = vld [vmem:[%s3 + $0x28] sm:$0xf]
    %v247 = vld [vmem:[%s3 + $0x2c] sm:$0xf]
    %v248 = vld [vmem:[%s3 + $0x30] sm:$0xf]
    %v249 = vld [vmem:[%s3 + $0x34] sm:$0xf]
    %v250 = vld [vmem:[%s3 + $0x38] sm:$0xf]
    %v251 = vld [vmem:[%s3 + $0x3c] sm:$0xf]
    %v252 = vld [vmem:[%s3 + $0x40] sm:$0xf]
    %v253 = vld [vmem:[%s3 + $0x44] sm:$0xf]
    %v254 = vld [vmem:[%s3 + $0x48] sm:$0xf]
    %v255 = vld [vmem:[%s3 + $0x4c] sm:$0xf]
    %v256 = vld [vmem:[%s3 + $0x50] sm:$0xf]
    %v257 = vld [vmem:[%s3 + $0x54] sm:$0xf]
    %v258 = vld [vmem:[%s3 + $0x58] sm:$0xf]
    %v259 = vld [vmem:[%s3 + $0x5c] sm:$0xf]
    %v260 = vld [vmem:[%s3 + $0x60] sm:$0xf]
    %v261 = vld [vmem:[%s3 + $0x64] sm:$0xf]
    %v262 = vld [vmem:[%s3 + $0x68] sm:$0xf]
    %v263 = vld [vmem:[%s3 + $0x6c] sm:$0xf]
    %v264 = vld [vmem:[%s3 + $0x70] sm:$0xf]
    %v265 = vld [vmem:[%s3 + $0x74] sm:$0xf]
    %v266 = vld [vmem:[%s3 + $0x78] sm:$0xf]
    %v267 = vld [vmem:[%s3 + $0x7c] sm:$0xf]
    %v300 = vunpack.c.l.b16 %v236
    %v301 = vunpack.c.l.b16 %v237
    %v302 = vunpack.c.l.b16 %v238
    %v303 = vunpack.c.l.b16 %v239
    %v304 = vunpack.c.l.b16 %v240
    %v305 = vunpack.c.l.b16 %v241
    %v306 = vunpack.c.l.b16 %v242
    %v307 = vunpack.c.l.b16 %v243
    %v308 = vunpack.c.l.b16 %v244
    %v309 = vunpack.c.l.b16 %v245
    %v310 = vunpack.c.l.b16 %v246
    %v311 = vunpack.c.l.b16 %v247
    %v312 = vunpack.c.l.b16 %v248
    %v313 = vunpack.c.l.b16 %v249
    %v314 = vunpack.c.l.b16 %v250
    %v315 = vunpack.c.l.b16 %v251
    %v316 = vunpack.c.l.b16 %v252
    %v317 = vunpack.c.l.b16 %v253
    %v318 = vunpack.c.l.b16 %v254
    %v319 = vunpack.c.l.b16 %v255
    %v320 = vunpack.c.l.b16 %v256
    %v321 = vunpack.c.l.b16 %v257
    %v322 = vunpack.c.l.b16 %v258
    %v323 = vunpack.c.l.b16 %v259
    %v324 = vunpack.c.l.b16 %v260
    %v325 = vunpack.c.l.b16 %v261
    %v326 = vunpack.c.l.b16 %v262
    %v327 = vunpack.c.l.b16 %v263
    %v328 = vunpack.c.l.b16 %v264
    %v329 = vunpack.c.l.b16 %v265
    %v330 = vunpack.c.l.b16 %v266
    %v331 = vunpack.c.l.b16 %v267
    %v332 = vpack.c.b16 %v301, %v300
    %v333 = vpack.c.b16 %v303, %v302
    %v334 = vpack.c.b16 %v305, %v304
    %v335 = vpack.c.b16 %v307, %v306
    %v336 = vpack.c.b16 %v309, %v308
    %v337 = vpack.c.b16 %v311, %v310
    %v338 = vpack.c.b16 %v313, %v312
    %v339 = vpack.c.b16 %v315, %v314
    %v340 = vpack.c.b16 %v317, %v316
    %v341 = vpack.c.b16 %v319, %v318
    %v342 = vpack.c.b16 %v321, %v320
    %v343 = vpack.c.b16 %v323, %v322
    %v344 = vpack.c.b16 %v325, %v324
    %v345 = vpack.c.b16 %v327, %v326
    %v346 = vpack.c.b16 %v329, %v328
    %v347 = vpack.c.b16 %v331, %v330
    %364 = vmatprep.subr.bf16.mxu0 0
    %365 = vmatpush1.bf16.msra.mxu0 %v339
    %366 = vmatprep.subr.bf16.mxu0 0
    %367 = vmatpush1.bf16.msra.mxu0 %v338
    %368 = vmatprep.subr.bf16.mxu0 0
    %369 = vmatpush1.bf16.msra.mxu0 %v337
    %370 = vmatprep.subr.bf16.mxu0 0
    %371 = vmatpush1.bf16.msra.mxu0 %v336
    %372 = vmatprep.subr.bf16.mxu0 0
    %373 = vmatpush1.bf16.msra.mxu0 %v335
    %374 = vmatprep.subr.bf16.mxu0 0
    %375 = vmatpush1.bf16.msra.mxu0 %v334
    %376 = vmatprep.subr.bf16.mxu0 0
    %377 = vmatpush1.bf16.msra.mxu0 %v333
    %378 = vmatprep.subr.bf16.mxu0 0
    %379 = vmatpush1.bf16.msra.mxu0 %v332
    %380 = vmatprep.subr.bf16.mxu0 0
    %381 = vmatpush2.bf16.msra.mxu0 %v347
    %382 = vmatprep.subr.bf16.mxu0 0
    %383 = vmatpush2.bf16.msra.mxu0 %v346
    %384 = vmatprep.subr.bf16.mxu0 0
    %385 = vmatpush2.bf16.msra.mxu0 %v345
    %386 = vmatprep.subr.bf16.mxu0 0
    %387 = vmatpush2.bf16.msra.mxu0 %v344
    %388 = vmatprep.subr.bf16.mxu0 0
    %389 = vmatpush2.bf16.msra.mxu0 %v343
    %390 = vmatprep.subr.bf16.mxu0 0
    %391 = vmatpush2.bf16.msra.mxu0 %v342
    %392 = vmatprep.subr.bf16.mxu0 0
    %393 = vmatpush2.bf16.msra.mxu0 %v341
    %394 = vmatprep.subr.bf16.mxu0 0
    %395 = vmatpush2.bf16.msra.mxu0 %v340
    %396 = vmatprep.mubr.bf16.mxu0 %v235
    %397 = vmatmul.mubr.bf16.gmra.mxu0 %v234
    %v398 = vpop.f32.mrf.mxu0
    %v399 = vadd.f32 0.0, %v398
    %v400 = vpop.f32.mrf.mxu0
    %v401 = vpop.f32.mrf.mxu0
    %v402 = vadd.f32 0.0, %v401
    %v403 = vpop.f32.mrf.mxu0
    %404 = vdwg.mxu0
    %v405 = vunpack.c.l.bf16 %v30
    %v406 = vunpack.c.l.bf16 %v31
    %v407 = vadd.f32 %v405, %v399
    %v408 = vadd.f32 %v406, %v402
    %v409 = vpack.c.bf16 %v408, %v407
    %v411 = vunpack.c.l.b16 %v409
    %v412 = vunpack.c.h.b16 %v409
    %v413 = vpack.c.b16 %v411, %v411
    %v414 = vpack.c.b16 %v412, %v412
    %417 = vst [vmem:[#allocation2] sm:$0xf] %v413
    %418 = vst [vmem:[#allocation2 + $0x4] sm:$0xf] %v414
    %vm419 = vcmask 7168
    %420 = vst.msk [vmem:[#allocation3] sm:$0xff] %vm419, -inf
    %421 = vst.msk [vmem:[#allocation3 + $0x8] sm:$0xff] %vm419, -inf
    %422 = vst.msk [vmem:[#allocation4] sm:$0xff] %vm419, 0.0
    %423 = vst.msk [vmem:[#allocation4 + $0x8] sm:$0xff] %vm419, 0.0
    %424 = vst.msk [vmem:[#allocation5] sm:$0xff] %vm419, 0.0
    %425 = vst.msk [vmem:[#allocation5 + $0x8] sm:$0xff] %vm419, 0.0
  $region29: #{mistral_icae_forward.3} parent=0 // pred_fallthru
    _
  %v426 = vld [vmem:[#allocation2] sm:$0xf]
  %v427 = vld [vmem:[#allocation2 + $0x4] sm:$0xf]
  %v428 = vld [vmem:[%s4] sm:$0xff]
  %v429 = vld [vmem:[%s4 + $0x8] sm:$0xff]
  %v430 = vld [vmem:[%s4 + $0x10] sm:$0xff]
  %v431 = vld [vmem:[%s4 + $0x18] sm:$0xff]
  %v432 = vld [vmem:[%s4 + $0x20] sm:$0xff]
  %v433 = vld [vmem:[%s4 + $0x28] sm:$0xff]
  %v434 = vld [vmem:[%s4 + $0x30] sm:$0xff]
  %v435 = vld [vmem:[%s4 + $0x38] sm:$0xff]
  %v436 = vld [vmem:[%s4 + $0x40] sm:$0xff]
  %v437 = vld [vmem:[%s4 + $0x48] sm:$0xff]
  %v438 = vld [vmem:[%s4 + $0x50] sm:$0xff]
  %v439 = vld [vmem:[%s4 + $0x58] sm:$0xff]
  %v440 = vld [vmem:[%s4 + $0x60] sm:$0xff]
  %v441 = vld [vmem:[%s4 + $0x68] sm:$0xff]
  %v442 = vld [vmem:[%s4 + $0x70] sm:$0xff]
  %v443 = vld [vmem:[%s4 + $0x78] sm:$0xff]
  %v446 = vunpack.c.l.b16 %v426
  %v447 = vunpack.c.l.b16 %v427
  %v448 = vpack.c.b16 %v447, %v446
  %v466 = vunpack.c.l.b16 %v428
  %v467 = vunpack.c.h.b16 %v428
  %v468 = vunpack.c.l.b16 %v429
  %v469 = vunpack.c.h.b16 %v429
  %v470 = vunpack.c.l.b16 %v430
  %v471 = vunpack.c.h.b16 %v430
  %v472 = vunpack.c.l.b16 %v431
  %v473 = vunpack.c.h.b16 %v431
  %v474 = vunpack.c.l.b16 %v432
  %v475 = vunpack.c.h.b16 %v432
  %v476 = vunpack.c.l.b16 %v433
  %v477 = vunpack.c.h.b16 %v433
  %v478 = vunpack.c.l.b16 %v434
  %v479 = vunpack.c.h.b16 %v434
  %v480 = vunpack.c.l.b16 %v435
  %v481 = vunpack.c.h.b16 %v435
  %v482 = vunpack.c.l.b16 %v436
  %v483 = vunpack.c.h.b16 %v436
  %v484 = vunpack.c.l.b16 %v437
  %v485 = vunpack.c.h.b16 %v437
  %v486 = vunpack.c.l.b16 %v438
  %v487 = vunpack.c.h.b16 %v438
  %v488 = vunpack.c.l.b16 %v439
  %v489 = vunpack.c.h.b16 %v439
  %v490 = vunpack.c.l.b16 %v440
  %v491 = vunpack.c.h.b16 %v440
  %v492 = vunpack.c.l.b16 %v441
  %v493 = vunpack.c.h.b16 %v441
  %v494 = vunpack.c.l.b16 %v442
  %v495 = vunpack.c.h.b16 %v442
  %v496 = vunpack.c.l.b16 %v443
  %v497 = vunpack.c.h.b16 %v443
  %v498 = vpack.c.b16 %v468, %v466
  %v499 = vpack.c.b16 %v469, %v467
  %v500 = vpack.c.b16 %v472, %v470
  %v501 = vpack.c.b16 %v473, %v471
  %v502 = vpack.c.b16 %v476, %v474
  %v503 = vpack.c.b16 %v477, %v475
  %v504 = vpack.c.b16 %v480, %v478
  %v505 = vpack.c.b16 %v481, %v479
  %v506 = vpack.c.b16 %v484, %v482
  %v507 = vpack.c.b16 %v485, %v483
  %v508 = vpack.c.b16 %v488, %v486
  %v509 = vpack.c.b16 %v489, %v487
  %v510 = vpack.c.b16 %v492, %v490
  %v511 = vpack.c.b16 %v493, %v491
  %v512 = vpack.c.b16 %v496, %v494
  %v513 = vpack.c.b16 %v497, %v495
  %530 = vmatprep.subr.bf16.mxu0 %v513
  %531 = vmatpush1.bf16.msra.mxu0 %v512
  %532 = vmatprep.subr.bf16.mxu0 %v511
  %533 = vmatpush1.bf16.msra.mxu0 %v510
  %534 = vmatprep.subr.bf16.mxu0 %v509
  %535 = vmatpush1.bf16.msra.mxu0 %v508
  %536 = vmatprep.subr.bf16.mxu0 %v507
  %537 = vmatpush1.bf16.msra.mxu0 %v506
  %538 = vmatprep.subr.bf16.mxu0 %v505
  %539 = vmatpush1.bf16.msra.mxu0 %v504
  %540 = vmatprep.subr.bf16.mxu0 %v503
  %541 = vmatpush1.bf16.msra.mxu0 %v502
  %542 = vmatprep.subr.bf16.mxu0 %v501
  %543 = vmatpush1.bf16.msra.mxu0 %v500
  %544 = vmatprep.subr.bf16.mxu0 %v499
  %545 = vmatpush1.bf16.msra.mxu0 %v498
  %546 = vmatprep.subr.bf16.mxu0 0
  %547 = vmatpush2.bf16.msra.mxu0 0
  %548 = vmatprep.subr.bf16.mxu0 0
  %549 = vmatpush2.bf16.msra.mxu0 0
  %550 = vmatprep.subr.bf16.mxu0 0
  %551 = vmatpush2.bf16.msra.mxu0 0
  %552 = vmatprep.subr.bf16.mxu0 0
  %553 = vmatpush2.bf16.msra.mxu0 0
  %554 = vmatprep.subr.bf16.mxu0 0
  %555 = vmatpush2.bf16.msra.mxu0 0
  %556 = vmatprep.subr.bf16.mxu0 0
  %557 = vmatpush2.bf16.msra.mxu0 0
  %558 = vmatprep.subr.bf16.mxu0 0
  %559 = vmatpush2.bf16.msra.mxu0 0
  %560 = vmatprep.subr.bf16.mxu0 0
  %561 = vmatpush2.bf16.msra.mxu0 0
  %562 = vmatprep.mubr.bf16.mxu0 0
  %563 = vmatmul.mubr.bf16.gmra.mxu0 %v448
  %v564 = vpop.f32.mrf.mxu0
  %v565 = vadd.f32 0.0, %v564
  %v566 = vpop.f32.mrf.mxu0
  %v567 = vadd.f32 0.0, %v566
  %v568 = vpop.f32.mrf.mxu0
  %v569 = vadd.f32 0.0, %v568
  %v570 = vpop.f32.mrf.mxu0
  %v571 = vadd.f32 0.0, %v570
  %572 = vdwg.mxu0
  %v573 = vpack.c.bf16 %v569, %v565
  %v574 = vpack.c.bf16 %v571, %v567
  %v577 = vunpack.c.l.b16 %v573
  %v578 = vunpack.c.l.b16 %v574
  %v579 = vunpack.c.h.b16 %v573
  %v580 = vunpack.c.h.b16 %v574
  %v581 = vpack.c.b16 %v578, %v577
  %v582 = vpack.c.b16 %v580, %v579
  %585 = vst [vmem:[%s6] sm:$0xff] %v581
  %586 = vst [vmem:[%s6 + $0x8] sm:$0xff] %v582
  %v587 = vlaneseq
  %v588 = vand.u32 %v587, 127
  %v589 = vadd.s32 %v588, 128
  %s590 = smul.u32 0, 256
  %v591 = vstv %s590
  %v592 = vadd.s32 %v588, %v591
  %v593 = vadd.s32 %v589, %v591
  %vm594 = vcmp.lt.s32.totalorder %v592, 133
  %vm595 = vcmp.lt.s32.totalorder %v593, 133
  %v596 = vsel %vm594, %v565, -1e+30
  %v597 = vsel %vm595, %v567, -1e+30
  %v598 = vsel %vm594, %v569, -1e+30
  %v599 = vsel %vm595, %v571, -1e+30
  %v600 = vld [vmem:[#allocation3] sm:$0xff]
  %v601 = vld [vmem:[#allocation3 + $0x8] sm:$0xff]
  %v602 = vmax.f32 %v596, %v597
  %603 = vmax.xlane.f32.xlu0 %v602
  %v604 = vpop.xlane.xlu0 %603
  %v605 = vmax.f32 %v598, %v599
  %606 = vmax.xlane.f32.xlu0 %v605
  %v607 = vpop.xlane.xlu0 %606
  %v608 = vmax.f32 %v600, %v604
  %v609 = vmax.f32 %v601, %v607
  %v610 = vsub.f32 %v600, %v608
  %v611 = vsub.f32 %v601, %v609
  %v612 = vmul.f32 %v610, 1.442695
  %v613 = vpow.pop %v612
  %v614 = vmul.f32 %v611, 1.442695
  %v615 = vpow.pop %v614
  %617 = vset.pattern.permute.xlu0 0
  %618 = vperm.xlu0 %617, %v608
  %v619 = vpop.permute.xlu0 %618
  %622 = vset.pattern.permute.xlu0 0
  %623 = vperm.xlu0 %622, %v609
  %v624 = vpop.permute.xlu0 %623
  %v626 = vsub.f32 %v596, %v619
  %v627 = vsub.f32 %v597, %v619
  %v628 = vsub.f32 %v598, %v624
  %v629 = vsub.f32 %v599, %v624
  %v630 = vmul.f32 %v626, 1.442695
  %v631 = vpow.pop %v630
  %v632 = vmul.f32 %v627, 1.442695
  %v633 = vpow.pop %v632
  %v634 = vmul.f32 %v628, 1.442695
  %v635 = vpow.pop %v634
  %v636 = vmul.f32 %v629, 1.442695
  %v637 = vpow.pop %v636
  %v638 = vsel %vm594, %v631, 0.0
  %v639 = vsel %vm595, %v633, 0.0
  %v640 = vsel %vm594, %v635, 0.0
  %v641 = vsel %vm595, %v637, 0.0
  %v642 = vadd.f32 %v638, %v639
  %643 = vadd.xlane.f32.xlu0 %v642
  %v644 = vpop.xlane.xlu0 %643
  %v645 = vadd.f32 %v640, %v641
  %646 = vadd.xlane.f32.xlu0 %v645
  %v647 = vpop.xlane.xlu0 %646
  %v648 = vld [vmem:[#allocation4] sm:$0xff]
  %v649 = vld [vmem:[#allocation4 + $0x8] sm:$0xff]
  %v650 = vmul.f32 %v613, %v648
  %v651 = vmul.f32 %v615, %v649
  %v652 = vadd.f32 %v650, %v644
  %v653 = vadd.f32 %v651, %v647
  %vm654 = vcmask 7168
  %655 = vst.msk [vmem:[#allocation4] sm:$0xff] %vm654, %v652
  %656 = vst.msk [vmem:[#allocation4 + $0x8] sm:$0xff] %vm654, %v653
  %657 = vst.msk [vmem:[#allocation3] sm:$0xff] %vm654, %v608
  %658 = vst.msk [vmem:[#allocation3 + $0x8] sm:$0xff] %vm654, %v609
  %v659 = vld [vmem:[%s5] sm:$0xff]
  %v660 = vld [vmem:[%s5 + $0x8] sm:$0xff]
  %v661 = vld [vmem:[#allocation5] sm:$0xff]
  %v662 = vld [vmem:[#allocation5 + $0x8] sm:$0xff]
  %663 = vset.pattern.permute.xlu0 0
  %664 = vperm.xlu0 %663, %v659
  %v665 = vpop.permute.xlu0 %664
  %666 = vset.pattern.permute.xlu0 0
  %667 = vperm.xlu0 %666, %v660
  %v668 = vpop.permute.xlu0 %667
  %vm669 = vcmp.eq.s32.totalorder %v592, %v665
  %vm670 = vcmp.eq.s32.totalorder %v593, %v665
  %vm671 = vcmp.eq.s32.totalorder %v592, %v668
  %vm672 = vcmp.eq.s32.totalorder %v593, %v668
  %v673 = vsel %vm669, %v565, 0.0
  %v674 = vsel %vm670, %v567, 0.0
  %v675 = vsel %vm671, %v569, 0.0
  %v676 = vsel %vm672, %v571, 0.0
  %v677 = vadd.f32 %v673, %v674
  %678 = vadd.xlane.f32.xlu0 %v677
  %v679 = vpop.xlane.xlu0 %678
  %v680 = vadd.f32 %v675, %v676
  %681 = vadd.xlane.f32.xlu0 %v680
  %v682 = vpop.xlane.xlu0 %681
  %v683 = vadd.f32 %v661, %v679
  %v684 = vadd.f32 %v662, %v682
  %685 = vst.msk [vmem:[#allocation5] sm:$0xff] %vm654, %v683
  %686 = vst.msk [vmem:[#allocation5 + $0x8] sm:$0xff] %vm654, %v684
  // Predicated region
  $region30: #{mistral_icae_forward.3} parent=0 // pred_check
    %p687 = pneg %p26
  $region31: #{mistral_icae_forward.3} parent=0 // pred_check_branch
    %689 = sbr.rel (%p687) target = $region33
  $region32: #{mistral_icae_forward.3} parent=0 // pred_region
    %v690 = vld [vmem:[#allocation4] sm:$0xff]
    %v691 = vld [vmem:[#allocation4 + $0x8] sm:$0xff]
    %v692 = vlog2.pop %v690
    %v693 = vmul.f32 %v692, 0.6931472
    %v694 = vlog2.pop %v691
    %v695 = vmul.f32 %v694, 0.6931472
    %v696 = vld [vmem:[#allocation3] sm:$0xff]
    %v697 = vld [vmem:[#allocation3 + $0x8] sm:$0xff]
    %v698 = vadd.f32 %v693, %v696
    %v699 = vadd.f32 %v695, %v697
    %v700 = vld [vmem:[%s5] sm:$0xff]
    %v701 = vld [vmem:[%s5 + $0x8] sm:$0xff]
    %vm702 = vcmp.ne.s32.totalorder %v700, 4294967196
    %vm703 = vcmp.ne.s32.totalorder %v701, 4294967196
    %v704 = vld [vmem:[#allocation5] sm:$0xff]
    %v705 = vld [vmem:[#allocation5 + $0x8] sm:$0xff]
    %v706 = vsub.f32 %v698, %v704
    %v707 = vsub.f32 %v699, %v705
    %v708 = vsel %vm702, %v706, 0.0
    %v709 = vsel %vm703, %v707, 0.0
    %710 = vst.msk [vmem:[%s7] sm:$0xff] %vm654, %v708
    %711 = vst.msk [vmem:[%s7 + $0x8] sm:$0xff] %vm654, %v709
  $region33: #{mistral_icae_forward.3} parent=0 // pred_fallthru
    _
  // Predicated region
  $region34: #{mistral_icae_forward.3} parent=0 // pred_check
    _
  $region35: #{mistral_icae_forward.3} parent=0 // pred_check_branch
    %713 = sbr.rel (0) target = $region37
  $region36: #{mistral_icae_forward.3} parent=0 // pred_region
    _
  $region37: #{mistral_icae_forward.3} parent=0 // pred_fallthru
    _
  // Predicated region
  $region38: #{mistral_icae_forward.3} parent=0 // pred_check
    _
  $region39: #{mistral_icae_forward.3} parent=0 // pred_check_branch
    %715 = sbr.rel (0) target = $region41
  $region40: #{mistral_icae_forward.3} parent=0 // pred_region
    _
  $region41: #{mistral_icae_forward.3} parent=0 // pred_fallthru
    _
  // Predicated region
  $region42: #{mistral_icae_forward.3} parent=0 // pred_check
    _
  $region43: #{mistral_icae_forward.3} parent=0 // pred_check_branch
    %717 = sbr.rel (0) target = $region45
  $region44: #{mistral_icae_forward.3} parent=0 // pred_region
    _
  $region45: #{mistral_icae_forward.3} parent=0 // pred_fallthru
    _
  // Predicated region
  $region46: #{mistral_icae_forward.3} parent=0 // pred_check
    _
  $region47: #{mistral_icae_forward.3} parent=0 // pred_check_branch
    %719 = sbr.rel (0) target = $region49
  $region48: #{mistral_icae_forward.3} parent=0 // pred_region
    _
  $region49: #{mistral_icae_forward.3} parent=0 // pred_fallthru
    _

</llo_original>
